<compile_context>
chip_gen: v7x
topology: tpu7x:2x2x1
jax: 0.10.0
libtpu: 0.0.40
codegen_flags: <defaults>
</compile_context>

<pallas_src>
import functools

import jax
import jax.numpy as jnp
from jax.experimental import pallas as pl
from jax.experimental.pallas import tpu as pltpu


def _cdiv(a, b):
    return -(-a // b)


def _round_up(a, m):
    return _cdiv(a, m) * m


def _round_dn(a, m):
    return (a // m) * m


def _kwta_row_kernel(x_ref, o_ref, *, k, largest, absolute, low_zero_bits, use_mxu):
    TR, Np = x_ref.shape
    INT_SIGN = jnp.int32(-(2 ** 31))      # 0x8000_0000
    NOT_SIGN = jnp.int32(0x7FFFFFFF)      # ~sign bit

    def widen(v):
        t = jnp.abs(v) if absolute else v
        return t.astype(jnp.float32)

    # Monotone int32 key of the float32 bit pattern:
    #   b >= 0 (incl. +0): key = b
    #   b <  0 (incl. -0): key = b ^ 0x7FFFFFFF
    # so that (float order) == (signed int32 key order). For "smallest" flip the
    # key order and search for the k-th largest anyway.
    b = pltpu.bitcast(widen(x_ref[...]), jnp.int32)
    if absolute:
        key = b                                        # abs() cleared the sign bit
    else:
        key = jnp.where(b >= 0, b, jnp.bitwise_xor(b, NOT_SIGN))
    work = key if largest else jnp.bitwise_not(key)
    # Only `work` (one int32 block) stays live across the radix loop; the f32
    # copy is recomputed after the loop (review: shrink the loop's live set).

    if absolute:
        # abs() fixes the sign bit of every key, so the MSB pass is predetermined.
        start_bit = 30
        init = jnp.full((TR, 1), -(2 ** 31) if largest else 0, dtype=jnp.int32)
    else:
        start_bit = 31
        init = jnp.zeros((TR, 1), jnp.int32)
    # bf16/f16 widened to f32 have `low_zero_bits` trailing zeros in every key
    # prefix-class, so the low bits never need to be searched (exact result).
    n_pass = start_bit - low_zero_bits + 1

    if use_mxu:
        ones = jnp.ones((Np, 128), jnp.bfloat16)       # hoisted out of the loop
        kf = jnp.float32(k)

    # Binary search (MSB -> LSB) for the k-th largest `work` key per row.
    # prefix_u holds the unsigned-style bit pattern of the answer; candidates are
    # compared in signed space via XOR with the sign bit.
    def body(i, prefix_u):
        bit = jnp.int32(start_bit) - i
        cand_u = jnp.bitwise_or(prefix_u, jnp.left_shift(jnp.int32(1), bit))
        cand_s = jnp.bitwise_xor(cand_u, INT_SIGN)
        ge = work >= cand_s
        if use_mxu:
            # Exact count on the MXU (0/1 bf16 products, f32 accumulation).
            cnt = jnp.dot(ge.astype(jnp.bfloat16), ones,
                          preferred_element_type=jnp.float32)[:, 0:1]
            keep = cnt >= kf
        else:
            keep = jnp.sum(ge.astype(jnp.int32), axis=-1, keepdims=True) >= k
        return jnp.where(keep, cand_u, prefix_u)

    prefix_u = jax.lax.fori_loop(0, n_pass, body, init, unroll=True)

    thr_work = jnp.bitwise_xor(prefix_u, INT_SIGN)                 # signed work key
    thr_key = thr_work if largest else jnp.bitwise_not(thr_work)
    thr_bits = jnp.where(thr_key >= 0, thr_key, jnp.bitwise_xor(thr_key, NOT_SIGN))
    thr = pltpu.bitcast(thr_bits, jnp.float32)                     # (TR, 1)

    # Final tie-inclusive compare in FLOAT space (matches torch topk-threshold
    # semantics, incl. -0.0 == +0.0 ties); tf is recomputed here (cheap).
    x = x_ref[...]
    tf = widen(x)
    mask = (tf >= thr) if largest else (thr >= tf)
    # TODO(synk): PyTorch computes comp * x, which yields NaN for masked-out
    # +/-inf (or NaN) inputs; jnp.where gives 0 there (identical for finite x).
    o_ref[...] = jnp.where(mask, x, jnp.zeros_like(x))


def _kwta_rows_topk(x2d, k, largest, absolute):
    # Pure-XLA fallback / reference path (used for rows too wide for one VMEM block).
    t = jnp.abs(x2d) if absolute else x2d
    if largest:
        thr = jax.lax.top_k(t, k)[0][:, -1:]
        mask = t >= thr
    else:
        thr = -jax.lax.top_k(-t, k)[0][:, -1:]
        mask = thr >= t
    return jnp.where(mask, x2d, jnp.zeros_like(x2d))


def _kwta_rows(x2d, k, largest, absolute):
    R, n = x2d.shape
    dtype = x2d.dtype
    k = int(k)
    if not (1 <= k <= n):
        raise ValueError(f"k={k} out of range for row size {n} (torch.topk would raise)")

    itemsize = jnp.dtype(dtype).itemsize
    pack = 8 * max(1, 4 // itemsize)      # sublane packing: f32 -> 8, bf16 -> 16

    if dtype == jnp.bfloat16:
        lzb = 16                          # 16 trailing zero bits after widening
    elif dtype == jnp.float16:
        lzb = 13
    else:
        lzb = 0

    # Per-generation VMEM limit (v5e/v6e: 128 MiB physical, v7x: 64 MiB per TC).
    phys_vmem = 64 * 1024 * 1024          # conservative default if query fails
    try:
        phys_vmem = int(pltpu.get_tpu_info().vmem_capacity_bytes)
    except Exception:
        pass
    vmem_limit = min(96 * 1024 * 1024, max(32 * 1024 * 1024, (phys_vmem * 3) // 4))
    budget = (vmem_limit * 3) // 5        # headroom under the scoped limit

    # Real per-step footprint: in + out blocks double-buffered (4*itemsize/elem)
    # plus the int32 key block and transient f32 temps (~16 B/elem).
    bytes_per_row = n * (4 * itemsize + 16)
    use_mxu = 512 <= n <= 32768           # MXU count path (ones matrix <= 8 MiB)
    mxu_bytes = n * 256 if use_mxu else 0

    if min(R, pack) * bytes_per_row + mxu_bytes > budget:
        # TODO(synk): stream column chunks (emit_pipeline) for very wide rows
        # instead of falling back to XLA's top_k.
        return _kwta_rows_topk(x2d, k, largest, absolute)

    tr_max = max(pack, (budget - mxu_bytes) // bytes_per_row)

    if R <= pack:
        tr = R                            # block == full row extent (always legal)
    else:
        tr = max(pack, _round_dn(min(tr_max, 4096, R), pack))
        steps = _cdiv(R, tr)
        if steps < 4 and R >= 4 * pack:
            steps = 4                     # v7x megacore: >= 2 blocks per TensorCore
        tr = max(pack, min(_round_dn(R, pack), _round_up(_cdiv(R, steps), pack)))
    steps = _cdiv(R, tr)

    kernel = functools.partial(
        _kwta_row_kernel, k=k, largest=largest, absolute=absolute,
        low_zero_bits=lzb, use_mxu=use_mxu)

    # TODO(synk): switch this axis to pltpu.CORE_PARALLEL on v7x once generation
    # detection is wired up; PARALLEL already shards multi-core grids.
    return pl.pallas_call(
        kernel,
        out_shape=jax.ShapeDtypeStruct((R, n), dtype),
        grid_spec=pltpu.PrefetchScalarGridSpec(
            num_scalar_prefetch=0,
            grid=(steps,),
            in_specs=[pl.BlockSpec((tr, n), lambda i: (i, 0))],
            out_specs=pl.BlockSpec((tr, n), lambda i: (i, 0)),
        ),
        compiler_params=pltpu.CompilerParams(
            dimension_semantics=("parallel",),
            vmem_limit_bytes=vmem_limit,
        ),
    )(x2d)


def _resolve_k(ratio, k, size):
    # Mirrors KWTA2d.__init__ parameter resolution + reduction selection.
    if ratio is None and k is None:
        keff = int(max(0.5 * size, 1))    # intmax(ratio=0.5 * size, k=1)
    elif ratio is not None and k is None:
        keff = int(ratio * size)          # onlyratiok
    elif ratio is None and k is not None:
        keff = int(k)                     # onlyk
    else:
        raise ValueError("custom reduction (ratio AND k) is not supported here")
    if not (1 <= keff <= size):
        raise ValueError(f"resolved k={keff} outside [1, {size}] (torch.topk would raise)")
    return keff


def kwta2d(x, *, largest=True, absolute=False, ratio=None, k=None, xchan=False):
    N, C, H, W = x.shape
    if not xchan:
        keff = _resolve_k(ratio, k, H * W)
        x2d = x.reshape(N * C, H * W)
    else:
        keff = _resolve_k(ratio, k, C * H * W)
        x2d = x.reshape(N, C * H * W)
    return _kwta_rows(x2d, keff, largest, absolute).reshape(N, C, H, W)


def kwta2d_ref(x, *, largest=True, absolute=False, ratio=None, k=None, xchan=False):
    # Pure-JAX reference matching the PyTorch module (for correctness checks).
    N, C, H, W = x.shape
    if not xchan:
        keff = _resolve_k(ratio, k, H * W)
        x2d = x.reshape(N * C, H * W)
    else:
        keff = _resolve_k(ratio, k, C * H * W)
        x2d = x.reshape(N, C * H * W)
    return _kwta_rows_topk(x2d, keff, largest, absolute).reshape(N, C, H, W)


if __name__ == "__main__":
    key = jax.random.PRNGKey(0)
    k0, k1, k2 = jax.random.split(key, 3)

    def check(out, ref, tag):
        assert out.shape == ref.shape and out.dtype == ref.dtype, tag
        assert jnp.array_equal(out, ref), f"mismatch ({tag})"

    # 1) Default KWTA2d(): largest=True, absolute=False, ratio/k None, channelwise.
    x = jax.random.normal(k0, (2, 4, 16, 16), dtype=jnp.float32)
    out = jax.block_until_ready(kwta2d(x))
    check(out, kwta2d_ref(x), "default")

    # 2) Cross-channel, absolute, ratio-based k (1024 cols -> MXU count path).
    out = jax.block_until_ready(kwta2d(x, absolute=True, ratio=0.25, xchan=True))
    check(out, kwta2d_ref(x, absolute=True, ratio=0.25, xchan=True), "xchan/abs/ratio")

    # 3) Smallest-k variant with explicit k.
    out = jax.block_until_ready(kwta2d(x, largest=False, k=37))
    check(out, kwta2d_ref(x, largest=False, k=37), "smallest/k")

    # 4) Non-128-aligned spatial size (unaligned lane dim, rows < sublane pack).
    y = jax.random.normal(k1, (2, 3, 10, 10), dtype=jnp.float32)
    out = jax.block_until_ready(kwta2d(y))
    check(out, kwta2d_ref(y), "unaligned")

    # 5) bf16 input (16-pass radix search) + multi-step grid with a ragged edge block.
    z = jax.random.normal(k2, (4, 5, 16, 16), dtype=jnp.float32).astype(jnp.bfloat16)
    out = jax.block_until_ready(kwta2d(z, k=100))
    check(out, kwta2d_ref(z, k=100), "bf16/ragged")

    print("KERNEL_OK")
</pallas_src>

<mosaic_0001>
module attributes {stable_mosaic.version = 11 : i64} {
  func.func @_kwta_row_kernel(%arg0: i32, %arg1: memref<8x256xf32, #tpu.memory_space<vmem>>, %arg2: memref<8x256xf32, #tpu.memory_space<vmem>>) attributes {dimension_semantics = [#tpu.dimension_semantics<parallel>], iteration_bounds = array<i64: 1>, scalar_prefetch = 0 : i64, scratch_operands = 0 : i64, tpu.core_type = #tpu.core_type<tc>, window_params = [{transform_indices = @transform_0, window_bounds = array<i64: 8, 256>}, {transform_indices = @transform_1, window_bounds = array<i64: 8, 256>}]} {
    %c0 = arith.constant 0 : index
    %c0_0 = arith.constant 0 : index
    %0 = vector.load %arg1[%c0, %c0_0] : memref<8x256xf32, #tpu.memory_space<vmem>>, vector<8x256xf32>
    %1 = tpu.bitcast %0 : vector<8x256xf32> -> vector<8x256xi32>
    %c0_i32 = arith.constant 0 : i32
    %2 = vector.broadcast %c0_i32 : i32 to vector<8x256xi32>
    %3 = arith.cmpi sge, %1, %2 : vector<8x256xi32>
    %c2147483647_i32 = arith.constant 2147483647 : i32
    %4 = vector.broadcast %c2147483647_i32 : i32 to vector<8x256xi32>
    %5 = arith.xori %1, %4 : vector<8x256xi32>
    %6 = arith.select %3, %1, %5 : vector<8x256xi1>, vector<8x256xi32>
    %c0_i32_1 = arith.constant 0 : i32
    %7 = vector.broadcast %c0_i32_1 : i32 to vector<8x1xi32>
    %c-2147483648_i32 = arith.constant -2147483648 : i32
    %c0_i32_2 = arith.constant 0 : i32
    %c31_i32 = arith.constant 31 : i32
    %8 = arith.subi %c31_i32, %c0_i32_2 : i32
    %c1_i32 = arith.constant 1 : i32
    %9 = arith.shli %c1_i32, %8 : i32
    %10 = vector.broadcast %9 : i32 to vector<8x1xi32>
    %11 = arith.ori %7, %10 : vector<8x1xi32>
    %12 = vector.broadcast %c-2147483648_i32 : i32 to vector<8x1xi32>
    %13 = arith.xori %11, %12 : vector<8x1xi32>
    %14 = vector.broadcast %13 : vector<8x1xi32> to vector<8x256xi32>
    %15 = arith.cmpi sge, %6, %14 : vector<8x256xi32>
    %16 = arith.extui %15 : vector<8x256xi1> to vector<8x256xi32>
    %cst = arith.constant dense<0> : vector<8xi32>
    %17 = vector.multi_reduction <add>, %16, %cst [1] : vector<8x256xi32> to vector<8xi32>
    %18 = vector.shape_cast %17 : vector<8xi32> to vector<8x1xi32>
    %c128_i32 = arith.constant 128 : i32
    %19 = vector.broadcast %c128_i32 : i32 to vector<8x1xi32>
    %20 = arith.cmpi sge, %18, %19 : vector<8x1xi32>
    %21 = arith.select %20, %11, %7 : vector<8x1xi1>, vector<8x1xi32>
    %c1_i32_3 = arith.constant 1 : i32
    %c31_i32_4 = arith.constant 31 : i32
    %22 = arith.subi %c31_i32_4, %c1_i32_3 : i32
    %c1_i32_5 = arith.constant 1 : i32
    %23 = arith.shli %c1_i32_5, %22 : i32
    %24 = vector.broadcast %23 : i32 to vector<8x1xi32>
    %25 = arith.ori %21, %24 : vector<8x1xi32>
    %26 = vector.broadcast %c-2147483648_i32 : i32 to vector<8x1xi32>
    %27 = arith.xori %25, %26 : vector<8x1xi32>
    %28 = vector.broadcast %27 : vector<8x1xi32> to vector<8x256xi32>
    %29 = arith.cmpi sge, %6, %28 : vector<8x256xi32>
    %30 = arith.extui %29 : vector<8x256xi1> to vector<8x256xi32>
    %cst_6 = arith.constant dense<0> : vector<8xi32>
    %31 = vector.multi_reduction <add>, %30, %cst_6 [1] : vector<8x256xi32> to vector<8xi32>
    %32 = vector.shape_cast %31 : vector<8xi32> to vector<8x1xi32>
    %c128_i32_7 = arith.constant 128 : i32
    %33 = vector.broadcast %c128_i32_7 : i32 to vector<8x1xi32>
    %34 = arith.cmpi sge, %32, %33 : vector<8x1xi32>
    %35 = arith.select %34, %25, %21 : vector<8x1xi1>, vector<8x1xi32>
    %c2_i32 = arith.constant 2 : i32
    %c31_i32_8 = arith.constant 31 : i32
    %36 = arith.subi %c31_i32_8, %c2_i32 : i32
    %c1_i32_9 = arith.constant 1 : i32
    %37 = arith.shli %c1_i32_9, %36 : i32
    %38 = vector.broadcast %37 : i32 to vector<8x1xi32>
    %39 = arith.ori %35, %38 : vector<8x1xi32>
    %40 = vector.broadcast %c-2147483648_i32 : i32 to vector<8x1xi32>
    %41 = arith.xori %39, %40 : vector<8x1xi32>
    %42 = vector.broadcast %41 : vector<8x1xi32> to vector<8x256xi32>
    %43 = arith.cmpi sge, %6, %42 : vector<8x256xi32>
    %44 = arith.extui %43 : vector<8x256xi1> to vector<8x256xi32>
    %cst_10 = arith.constant dense<0> : vector<8xi32>
    %45 = vector.multi_reduction <add>, %44, %cst_10 [1] : vector<8x256xi32> to vector<8xi32>
    %46 = vector.shape_cast %45 : vector<8xi32> to vector<8x1xi32>
    %c128_i32_11 = arith.constant 128 : i32
    %47 = vector.broadcast %c128_i32_11 : i32 to vector<8x1xi32>
    %48 = arith.cmpi sge, %46, %47 : vector<8x1xi32>
    %49 = arith.select %48, %39, %35 : vector<8x1xi1>, vector<8x1xi32>
    %c3_i32 = arith.constant 3 : i32
    %c31_i32_12 = arith.constant 31 : i32
    %50 = arith.subi %c31_i32_12, %c3_i32 : i32
    %c1_i32_13 = arith.constant 1 : i32
    %51 = arith.shli %c1_i32_13, %50 : i32
    %52 = vector.broadcast %51 : i32 to vector<8x1xi32>
    %53 = arith.ori %49, %52 : vector<8x1xi32>
    %54 = vector.broadcast %c-2147483648_i32 : i32 to vector<8x1xi32>
    %55 = arith.xori %53, %54 : vector<8x1xi32>
    %56 = vector.broadcast %55 : vector<8x1xi32> to vector<8x256xi32>
    %57 = arith.cmpi sge, %6, %56 : vector<8x256xi32>
    %58 = arith.extui %57 : vector<8x256xi1> to vector<8x256xi32>
    %cst_14 = arith.constant dense<0> : vector<8xi32>
    %59 = vector.multi_reduction <add>, %58, %cst_14 [1] : vector<8x256xi32> to vector<8xi32>
    %60 = vector.shape_cast %59 : vector<8xi32> to vector<8x1xi32>
    %c128_i32_15 = arith.constant 128 : i32
    %61 = vector.broadcast %c128_i32_15 : i32 to vector<8x1xi32>
    %62 = arith.cmpi sge, %60, %61 : vector<8x1xi32>
    %63 = arith.select %62, %53, %49 : vector<8x1xi1>, vector<8x1xi32>
    %c4_i32 = arith.constant 4 : i32
    %c31_i32_16 = arith.constant 31 : i32
    %64 = arith.subi %c31_i32_16, %c4_i32 : i32
    %c1_i32_17 = arith.constant 1 : i32
    %65 = arith.shli %c1_i32_17, %64 : i32
    %66 = vector.broadcast %65 : i32 to vector<8x1xi32>
    %67 = arith.ori %63, %66 : vector<8x1xi32>
    %68 = vector.broadcast %c-2147483648_i32 : i32 to vector<8x1xi32>
    %69 = arith.xori %67, %68 : vector<8x1xi32>
    %70 = vector.broadcast %69 : vector<8x1xi32> to vector<8x256xi32>
    %71 = arith.cmpi sge, %6, %70 : vector<8x256xi32>
    %72 = arith.extui %71 : vector<8x256xi1> to vector<8x256xi32>
    %cst_18 = arith.constant dense<0> : vector<8xi32>
    %73 = vector.multi_reduction <add>, %72, %cst_18 [1] : vector<8x256xi32> to vector<8xi32>
    %74 = vector.shape_cast %73 : vector<8xi32> to vector<8x1xi32>
    %c128_i32_19 = arith.constant 128 : i32
    %75 = vector.broadcast %c128_i32_19 : i32 to vector<8x1xi32>
    %76 = arith.cmpi sge, %74, %75 : vector<8x1xi32>
    %77 = arith.select %76, %67, %63 : vector<8x1xi1>, vector<8x1xi32>
    %c5_i32 = arith.constant 5 : i32
    %c31_i32_20 = arith.constant 31 : i32
    %78 = arith.subi %c31_i32_20, %c5_i32 : i32
    %c1_i32_21 = arith.constant 1 : i32
    %79 = arith.shli %c1_i32_21, %78 : i32
    %80 = vector.broadcast %79 : i32 to vector<8x1xi32>
    %81 = arith.ori %77, %80 : vector<8x1xi32>
    %82 = vector.broadcast %c-2147483648_i32 : i32 to vector<8x1xi32>
    %83 = arith.xori %81, %82 : vector<8x1xi32>
    %84 = vector.broadcast %83 : vector<8x1xi32> to vector<8x256xi32>
    %85 = arith.cmpi sge, %6, %84 : vector<8x256xi32>
    %86 = arith.extui %85 : vector<8x256xi1> to vector<8x256xi32>
    %cst_22 = arith.constant dense<0> : vector<8xi32>
    %87 = vector.multi_reduction <add>, %86, %cst_22 [1] : vector<8x256xi32> to vector<8xi32>
    %88 = vector.shape_cast %87 : vector<8xi32> to vector<8x1xi32>
    %c128_i32_23 = arith.constant 128 : i32
    %89 = vector.broadcast %c128_i32_23 : i32 to vector<8x1xi32>
    %90 = arith.cmpi sge, %88, %89 : vector<8x1xi32>
    %91 = arith.select %90, %81, %77 : vector<8x1xi1>, vector<8x1xi32>
    %c6_i32 = arith.constant 6 : i32
    %c31_i32_24 = arith.constant 31 : i32
    %92 = arith.subi %c31_i32_24, %c6_i32 : i32
    %c1_i32_25 = arith.constant 1 : i32
    %93 = arith.shli %c1_i32_25, %92 : i32
    %94 = vector.broadcast %93 : i32 to vector<8x1xi32>
    %95 = arith.ori %91, %94 : vector<8x1xi32>
    %96 = vector.broadcast %c-2147483648_i32 : i32 to vector<8x1xi32>
    %97 = arith.xori %95, %96 : vector<8x1xi32>
    %98 = vector.broadcast %97 : vector<8x1xi32> to vector<8x256xi32>
    %99 = arith.cmpi sge, %6, %98 : vector<8x256xi32>
    %100 = arith.extui %99 : vector<8x256xi1> to vector<8x256xi32>
    %cst_26 = arith.constant dense<0> : vector<8xi32>
    %101 = vector.multi_reduction <add>, %100, %cst_26 [1] : vector<8x256xi32> to vector<8xi32>
    %102 = vector.shape_cast %101 : vector<8xi32> to vector<8x1xi32>
    %c128_i32_27 = arith.constant 128 : i32
    %103 = vector.broadcast %c128_i32_27 : i32 to vector<8x1xi32>
    %104 = arith.cmpi sge, %102, %103 : vector<8x1xi32>
    %105 = arith.select %104, %95, %91 : vector<8x1xi1>, vector<8x1xi32>
    %c7_i32 = arith.constant 7 : i32
    %c31_i32_28 = arith.constant 31 : i32
    %106 = arith.subi %c31_i32_28, %c7_i32 : i32
    %c1_i32_29 = arith.constant 1 : i32
    %107 = arith.shli %c1_i32_29, %106 : i32
    %108 = vector.broadcast %107 : i32 to vector<8x1xi32>
    %109 = arith.ori %105, %108 : vector<8x1xi32>
    %110 = vector.broadcast %c-2147483648_i32 : i32 to vector<8x1xi32>
    %111 = arith.xori %109, %110 : vector<8x1xi32>
    %112 = vector.broadcast %111 : vector<8x1xi32> to vector<8x256xi32>
    %113 = arith.cmpi sge, %6, %112 : vector<8x256xi32>
    %114 = arith.extui %113 : vector<8x256xi1> to vector<8x256xi32>
    %cst_30 = arith.constant dense<0> : vector<8xi32>
    %115 = vector.multi_reduction <add>, %114, %cst_30 [1] : vector<8x256xi32> to vector<8xi32>
    %116 = vector.shape_cast %115 : vector<8xi32> to vector<8x1xi32>
    %c128_i32_31 = arith.constant 128 : i32
    %117 = vector.broadcast %c128_i32_31 : i32 to vector<8x1xi32>
    %118 = arith.cmpi sge, %116, %117 : vector<8x1xi32>
    %119 = arith.select %118, %109, %105 : vector<8x1xi1>, vector<8x1xi32>
    %c8_i32 = arith.constant 8 : i32
    %c31_i32_32 = arith.constant 31 : i32
    %120 = arith.subi %c31_i32_32, %c8_i32 : i32
    %c1_i32_33 = arith.constant 1 : i32
    %121 = arith.shli %c1_i32_33, %120 : i32
    %122 = vector.broadcast %121 : i32 to vector<8x1xi32>
    %123 = arith.ori %119, %122 : vector<8x1xi32>
    %124 = vector.broadcast %c-2147483648_i32 : i32 to vector<8x1xi32>
    %125 = arith.xori %123, %124 : vector<8x1xi32>
    %126 = vector.broadcast %125 : vector<8x1xi32> to vector<8x256xi32>
    %127 = arith.cmpi sge, %6, %126 : vector<8x256xi32>
    %128 = arith.extui %127 : vector<8x256xi1> to vector<8x256xi32>
    %cst_34 = arith.constant dense<0> : vector<8xi32>
    %129 = vector.multi_reduction <add>, %128, %cst_34 [1] : vector<8x256xi32> to vector<8xi32>
    %130 = vector.shape_cast %129 : vector<8xi32> to vector<8x1xi32>
    %c128_i32_35 = arith.constant 128 : i32
    %131 = vector.broadcast %c128_i32_35 : i32 to vector<8x1xi32>
    %132 = arith.cmpi sge, %130, %131 : vector<8x1xi32>
    %133 = arith.select %132, %123, %119 : vector<8x1xi1>, vector<8x1xi32>
    %c9_i32 = arith.constant 9 : i32
    %c31_i32_36 = arith.constant 31 : i32
    %134 = arith.subi %c31_i32_36, %c9_i32 : i32
    %c1_i32_37 = arith.constant 1 : i32
    %135 = arith.shli %c1_i32_37, %134 : i32
    %136 = vector.broadcast %135 : i32 to vector<8x1xi32>
    %137 = arith.ori %133, %136 : vector<8x1xi32>
    %138 = vector.broadcast %c-2147483648_i32 : i32 to vector<8x1xi32>
    %139 = arith.xori %137, %138 : vector<8x1xi32>
    %140 = vector.broadcast %139 : vector<8x1xi32> to vector<8x256xi32>
    %141 = arith.cmpi sge, %6, %140 : vector<8x256xi32>
    %142 = arith.extui %141 : vector<8x256xi1> to vector<8x256xi32>
    %cst_38 = arith.constant dense<0> : vector<8xi32>
    %143 = vector.multi_reduction <add>, %142, %cst_38 [1] : vector<8x256xi32> to vector<8xi32>
    %144 = vector.shape_cast %143 : vector<8xi32> to vector<8x1xi32>
    %c128_i32_39 = arith.constant 128 : i32
    %145 = vector.broadcast %c128_i32_39 : i32 to vector<8x1xi32>
    %146 = arith.cmpi sge, %144, %145 : vector<8x1xi32>
    %147 = arith.select %146, %137, %133 : vector<8x1xi1>, vector<8x1xi32>
    %c10_i32 = arith.constant 10 : i32
    %c31_i32_40 = arith.constant 31 : i32
    %148 = arith.subi %c31_i32_40, %c10_i32 : i32
    %c1_i32_41 = arith.constant 1 : i32
    %149 = arith.shli %c1_i32_41, %148 : i32
    %150 = vector.broadcast %149 : i32 to vector<8x1xi32>
    %151 = arith.ori %147, %150 : vector<8x1xi32>
    %152 = vector.broadcast %c-2147483648_i32 : i32 to vector<8x1xi32>
    %153 = arith.xori %151, %152 : vector<8x1xi32>
    %154 = vector.broadcast %153 : vector<8x1xi32> to vector<8x256xi32>
    %155 = arith.cmpi sge, %6, %154 : vector<8x256xi32>
    %156 = arith.extui %155 : vector<8x256xi1> to vector<8x256xi32>
    %cst_42 = arith.constant dense<0> : vector<8xi32>
    %157 = vector.multi_reduction <add>, %156, %cst_42 [1] : vector<8x256xi32> to vector<8xi32>
    %158 = vector.shape_cast %157 : vector<8xi32> to vector<8x1xi32>
    %c128_i32_43 = arith.constant 128 : i32
    %159 = vector.broadcast %c128_i32_43 : i32 to vector<8x1xi32>
    %160 = arith.cmpi sge, %158, %159 : vector<8x1xi32>
    %161 = arith.select %160, %151, %147 : vector<8x1xi1>, vector<8x1xi32>
    %c11_i32 = arith.constant 11 : i32
    %c31_i32_44 = arith.constant 31 : i32
    %162 = arith.subi %c31_i32_44, %c11_i32 : i32
    %c1_i32_45 = arith.constant 1 : i32
    %163 = arith.shli %c1_i32_45, %162 : i32
    %164 = vector.broadcast %163 : i32 to vector<8x1xi32>
    %165 = arith.ori %161, %164 : vector<8x1xi32>
    %166 = vector.broadcast %c-2147483648_i32 : i32 to vector<8x1xi32>
    %167 = arith.xori %165, %166 : vector<8x1xi32>
    %168 = vector.broadcast %167 : vector<8x1xi32> to vector<8x256xi32>
    %169 = arith.cmpi sge, %6, %168 : vector<8x256xi32>
    %170 = arith.extui %169 : vector<8x256xi1> to vector<8x256xi32>
    %cst_46 = arith.constant dense<0> : vector<8xi32>
    %171 = vector.multi_reduction <add>, %170, %cst_46 [1] : vector<8x256xi32> to vector<8xi32>
    %172 = vector.shape_cast %171 : vector<8xi32> to vector<8x1xi32>
    %c128_i32_47 = arith.constant 128 : i32
    %173 = vector.broadcast %c128_i32_47 : i32 to vector<8x1xi32>
    %174 = arith.cmpi sge, %172, %173 : vector<8x1xi32>
    %175 = arith.select %174, %165, %161 : vector<8x1xi1>, vector<8x1xi32>
    %c12_i32 = arith.constant 12 : i32
    %c31_i32_48 = arith.constant 31 : i32
    %176 = arith.subi %c31_i32_48, %c12_i32 : i32
    %c1_i32_49 = arith.constant 1 : i32
    %177 = arith.shli %c1_i32_49, %176 : i32
    %178 = vector.broadcast %177 : i32 to vector<8x1xi32>
    %179 = arith.ori %175, %178 : vector<8x1xi32>
    %180 = vector.broadcast %c-2147483648_i32 : i32 to vector<8x1xi32>
    %181 = arith.xori %179, %180 : vector<8x1xi32>
    %182 = vector.broadcast %181 : vector<8x1xi32> to vector<8x256xi32>
    %183 = arith.cmpi sge, %6, %182 : vector<8x256xi32>
    %184 = arith.extui %183 : vector<8x256xi1> to vector<8x256xi32>
    %cst_50 = arith.constant dense<0> : vector<8xi32>
    %185 = vector.multi_reduction <add>, %184, %cst_50 [1] : vector<8x256xi32> to vector<8xi32>
    %186 = vector.shape_cast %185 : vector<8xi32> to vector<8x1xi32>
    %c128_i32_51 = arith.constant 128 : i32
    %187 = vector.broadcast %c128_i32_51 : i32 to vector<8x1xi32>
    %188 = arith.cmpi sge, %186, %187 : vector<8x1xi32>
    %189 = arith.select %188, %179, %175 : vector<8x1xi1>, vector<8x1xi32>
    %c13_i32 = arith.constant 13 : i32
    %c31_i32_52 = arith.constant 31 : i32
    %190 = arith.subi %c31_i32_52, %c13_i32 : i32
    %c1_i32_53 = arith.constant 1 : i32
    %191 = arith.shli %c1_i32_53, %190 : i32
    %192 = vector.broadcast %191 : i32 to vector<8x1xi32>
    %193 = arith.ori %189, %192 : vector<8x1xi32>
    %194 = vector.broadcast %c-2147483648_i32 : i32 to vector<8x1xi32>
    %195 = arith.xori %193, %194 : vector<8x1xi32>
    %196 = vector.broadcast %195 : vector<8x1xi32> to vector<8x256xi32>
    %197 = arith.cmpi sge, %6, %196 : vector<8x256xi32>
    %198 = arith.extui %197 : vector<8x256xi1> to vector<8x256xi32>
    %cst_54 = arith.constant dense<0> : vector<8xi32>
    %199 = vector.multi_reduction <add>, %198, %cst_54 [1] : vector<8x256xi32> to vector<8xi32>
    %200 = vector.shape_cast %199 : vector<8xi32> to vector<8x1xi32>
    %c128_i32_55 = arith.constant 128 : i32
    %201 = vector.broadcast %c128_i32_55 : i32 to vector<8x1xi32>
    %202 = arith.cmpi sge, %200, %201 : vector<8x1xi32>
    %203 = arith.select %202, %193, %189 : vector<8x1xi1>, vector<8x1xi32>
    %c14_i32 = arith.constant 14 : i32
    %c31_i32_56 = arith.constant 31 : i32
    %204 = arith.subi %c31_i32_56, %c14_i32 : i32
    %c1_i32_57 = arith.constant 1 : i32
    %205 = arith.shli %c1_i32_57, %204 : i32
    %206 = vector.broadcast %205 : i32 to vector<8x1xi32>
    %207 = arith.ori %203, %206 : vector<8x1xi32>
    %208 = vector.broadcast %c-2147483648_i32 : i32 to vector<8x1xi32>
    %209 = arith.xori %207, %208 : vector<8x1xi32>
    %210 = vector.broadcast %209 : vector<8x1xi32> to vector<8x256xi32>
    %211 = arith.cmpi sge, %6, %210 : vector<8x256xi32>
    %212 = arith.extui %211 : vector<8x256xi1> to vector<8x256xi32>
    %cst_58 = arith.constant dense<0> : vector<8xi32>
    %213 = vector.multi_reduction <add>, %212, %cst_58 [1] : vector<8x256xi32> to vector<8xi32>
    %214 = vector.shape_cast %213 : vector<8xi32> to vector<8x1xi32>
    %c128_i32_59 = arith.constant 128 : i32
    %215 = vector.broadcast %c128_i32_59 : i32 to vector<8x1xi32>
    %216 = arith.cmpi sge, %214, %215 : vector<8x1xi32>
    %217 = arith.select %216, %207, %203 : vector<8x1xi1>, vector<8x1xi32>
    %c15_i32 = arith.constant 15 : i32
    %c31_i32_60 = arith.constant 31 : i32
    %218 = arith.subi %c31_i32_60, %c15_i32 : i32
    %c1_i32_61 = arith.constant 1 : i32
    %219 = arith.shli %c1_i32_61, %218 : i32
    %220 = vector.broadcast %219 : i32 to vector<8x1xi32>
    %221 = arith.ori %217, %220 : vector<8x1xi32>
    %222 = vector.broadcast %c-2147483648_i32 : i32 to vector<8x1xi32>
    %223 = arith.xori %221, %222 : vector<8x1xi32>
    %224 = vector.broadcast %223 : vector<8x1xi32> to vector<8x256xi32>
    %225 = arith.cmpi sge, %6, %224 : vector<8x256xi32>
    %226 = arith.extui %225 : vector<8x256xi1> to vector<8x256xi32>
    %cst_62 = arith.constant dense<0> : vector<8xi32>
    %227 = vector.multi_reduction <add>, %226, %cst_62 [1] : vector<8x256xi32> to vector<8xi32>
    %228 = vector.shape_cast %227 : vector<8xi32> to vector<8x1xi32>
    %c128_i32_63 = arith.constant 128 : i32
    %229 = vector.broadcast %c128_i32_63 : i32 to vector<8x1xi32>
    %230 = arith.cmpi sge, %228, %229 : vector<8x1xi32>
    %231 = arith.select %230, %221, %217 : vector<8x1xi1>, vector<8x1xi32>
    %c16_i32 = arith.constant 16 : i32
    %c31_i32_64 = arith.constant 31 : i32
    %232 = arith.subi %c31_i32_64, %c16_i32 : i32
    %c1_i32_65 = arith.constant 1 : i32
    %233 = arith.shli %c1_i32_65, %232 : i32
    %234 = vector.broadcast %233 : i32 to vector<8x1xi32>
    %235 = arith.ori %231, %234 : vector<8x1xi32>
    %236 = vector.broadcast %c-2147483648_i32 : i32 to vector<8x1xi32>
    %237 = arith.xori %235, %236 : vector<8x1xi32>
    %238 = vector.broadcast %237 : vector<8x1xi32> to vector<8x256xi32>
    %239 = arith.cmpi sge, %6, %238 : vector<8x256xi32>
    %240 = arith.extui %239 : vector<8x256xi1> to vector<8x256xi32>
    %cst_66 = arith.constant dense<0> : vector<8xi32>
    %241 = vector.multi_reduction <add>, %240, %cst_66 [1] : vector<8x256xi32> to vector<8xi32>
    %242 = vector.shape_cast %241 : vector<8xi32> to vector<8x1xi32>
    %c128_i32_67 = arith.constant 128 : i32
    %243 = vector.broadcast %c128_i32_67 : i32 to vector<8x1xi32>
    %244 = arith.cmpi sge, %242, %243 : vector<8x1xi32>
    %245 = arith.select %244, %235, %231 : vector<8x1xi1>, vector<8x1xi32>
    %c17_i32 = arith.constant 17 : i32
    %c31_i32_68 = arith.constant 31 : i32
    %246 = arith.subi %c31_i32_68, %c17_i32 : i32
    %c1_i32_69 = arith.constant 1 : i32
    %247 = arith.shli %c1_i32_69, %246 : i32
    %248 = vector.broadcast %247 : i32 to vector<8x1xi32>
    %249 = arith.ori %245, %248 : vector<8x1xi32>
    %250 = vector.broadcast %c-2147483648_i32 : i32 to vector<8x1xi32>
    %251 = arith.xori %249, %250 : vector<8x1xi32>
    %252 = vector.broadcast %251 : vector<8x1xi32> to vector<8x256xi32>
    %253 = arith.cmpi sge, %6, %252 : vector<8x256xi32>
    %254 = arith.extui %253 : vector<8x256xi1> to vector<8x256xi32>
    %cst_70 = arith.constant dense<0> : vector<8xi32>
    %255 = vector.multi_reduction <add>, %254, %cst_70 [1] : vector<8x256xi32> to vector<8xi32>
    %256 = vector.shape_cast %255 : vector<8xi32> to vector<8x1xi32>
    %c128_i32_71 = arith.constant 128 : i32
    %257 = vector.broadcast %c128_i32_71 : i32 to vector<8x1xi32>
    %258 = arith.cmpi sge, %256, %257 : vector<8x1xi32>
    %259 = arith.select %258, %249, %245 : vector<8x1xi1>, vector<8x1xi32>
    %c18_i32 = arith.constant 18 : i32
    %c31_i32_72 = arith.constant 31 : i32
    %260 = arith.subi %c31_i32_72, %c18_i32 : i32
    %c1_i32_73 = arith.constant 1 : i32
    %261 = arith.shli %c1_i32_73, %260 : i32
    %262 = vector.broadcast %261 : i32 to vector<8x1xi32>
    %263 = arith.ori %259, %262 : vector<8x1xi32>
    %264 = vector.broadcast %c-2147483648_i32 : i32 to vector<8x1xi32>
    %265 = arith.xori %263, %264 : vector<8x1xi32>
    %266 = vector.broadcast %265 : vector<8x1xi32> to vector<8x256xi32>
    %267 = arith.cmpi sge, %6, %266 : vector<8x256xi32>
    %268 = arith.extui %267 : vector<8x256xi1> to vector<8x256xi32>
    %cst_74 = arith.constant dense<0> : vector<8xi32>
    %269 = vector.multi_reduction <add>, %268, %cst_74 [1] : vector<8x256xi32> to vector<8xi32>
    %270 = vector.shape_cast %269 : vector<8xi32> to vector<8x1xi32>
    %c128_i32_75 = arith.constant 128 : i32
    %271 = vector.broadcast %c128_i32_75 : i32 to vector<8x1xi32>
    %272 = arith.cmpi sge, %270, %271 : vector<8x1xi32>
    %273 = arith.select %272, %263, %259 : vector<8x1xi1>, vector<8x1xi32>
    %c19_i32 = arith.constant 19 : i32
    %c31_i32_76 = arith.constant 31 : i32
    %274 = arith.subi %c31_i32_76, %c19_i32 : i32
    %c1_i32_77 = arith.constant 1 : i32
    %275 = arith.shli %c1_i32_77, %274 : i32
    %276 = vector.broadcast %275 : i32 to vector<8x1xi32>
    %277 = arith.ori %273, %276 : vector<8x1xi32>
    %278 = vector.broadcast %c-2147483648_i32 : i32 to vector<8x1xi32>
    %279 = arith.xori %277, %278 : vector<8x1xi32>
    %280 = vector.broadcast %279 : vector<8x1xi32> to vector<8x256xi32>
    %281 = arith.cmpi sge, %6, %280 : vector<8x256xi32>
    %282 = arith.extui %281 : vector<8x256xi1> to vector<8x256xi32>
    %cst_78 = arith.constant dense<0> : vector<8xi32>
    %283 = vector.multi_reduction <add>, %282, %cst_78 [1] : vector<8x256xi32> to vector<8xi32>
    %284 = vector.shape_cast %283 : vector<8xi32> to vector<8x1xi32>
    %c128_i32_79 = arith.constant 128 : i32
    %285 = vector.broadcast %c128_i32_79 : i32 to vector<8x1xi32>
    %286 = arith.cmpi sge, %284, %285 : vector<8x1xi32>
    %287 = arith.select %286, %277, %273 : vector<8x1xi1>, vector<8x1xi32>
    %c20_i32 = arith.constant 20 : i32
    %c31_i32_80 = arith.constant 31 : i32
    %288 = arith.subi %c31_i32_80, %c20_i32 : i32
    %c1_i32_81 = arith.constant 1 : i32
    %289 = arith.shli %c1_i32_81, %288 : i32
    %290 = vector.broadcast %289 : i32 to vector<8x1xi32>
    %291 = arith.ori %287, %290 : vector<8x1xi32>
    %292 = vector.broadcast %c-2147483648_i32 : i32 to vector<8x1xi32>
    %293 = arith.xori %291, %292 : vector<8x1xi32>
    %294 = vector.broadcast %293 : vector<8x1xi32> to vector<8x256xi32>
    %295 = arith.cmpi sge, %6, %294 : vector<8x256xi32>
    %296 = arith.extui %295 : vector<8x256xi1> to vector<8x256xi32>
    %cst_82 = arith.constant dense<0> : vector<8xi32>
    %297 = vector.multi_reduction <add>, %296, %cst_82 [1] : vector<8x256xi32> to vector<8xi32>
    %298 = vector.shape_cast %297 : vector<8xi32> to vector<8x1xi32>
    %c128_i32_83 = arith.constant 128 : i32
    %299 = vector.broadcast %c128_i32_83 : i32 to vector<8x1xi32>
    %300 = arith.cmpi sge, %298, %299 : vector<8x1xi32>
    %301 = arith.select %300, %291, %287 : vector<8x1xi1>, vector<8x1xi32>
    %c21_i32 = arith.constant 21 : i32
    %c31_i32_84 = arith.constant 31 : i32
    %302 = arith.subi %c31_i32_84, %c21_i32 : i32
    %c1_i32_85 = arith.constant 1 : i32
    %303 = arith.shli %c1_i32_85, %302 : i32
    %304 = vector.broadcast %303 : i32 to vector<8x1xi32>
    %305 = arith.ori %301, %304 : vector<8x1xi32>
    %306 = vector.broadcast %c-2147483648_i32 : i32 to vector<8x1xi32>
    %307 = arith.xori %305, %306 : vector<8x1xi32>
    %308 = vector.broadcast %307 : vector<8x1xi32> to vector<8x256xi32>
    %309 = arith.cmpi sge, %6, %308 : vector<8x256xi32>
    %310 = arith.extui %309 : vector<8x256xi1> to vector<8x256xi32>
    %cst_86 = arith.constant dense<0> : vector<8xi32>
    %311 = vector.multi_reduction <add>, %310, %cst_86 [1] : vector<8x256xi32> to vector<8xi32>
    %312 = vector.shape_cast %311 : vector<8xi32> to vector<8x1xi32>
    %c128_i32_87 = arith.constant 128 : i32
    %313 = vector.broadcast %c128_i32_87 : i32 to vector<8x1xi32>
    %314 = arith.cmpi sge, %312, %313 : vector<8x1xi32>
    %315 = arith.select %314, %305, %301 : vector<8x1xi1>, vector<8x1xi32>
    %c22_i32 = arith.constant 22 : i32
    %c31_i32_88 = arith.constant 31 : i32
    %316 = arith.subi %c31_i32_88, %c22_i32 : i32
    %c1_i32_89 = arith.constant 1 : i32
    %317 = arith.shli %c1_i32_89, %316 : i32
    %318 = vector.broadcast %317 : i32 to vector<8x1xi32>
    %319 = arith.ori %315, %318 : vector<8x1xi32>
    %320 = vector.broadcast %c-2147483648_i32 : i32 to vector<8x1xi32>
    %321 = arith.xori %319, %320 : vector<8x1xi32>
    %322 = vector.broadcast %321 : vector<8x1xi32> to vector<8x256xi32>
    %323 = arith.cmpi sge, %6, %322 : vector<8x256xi32>
    %324 = arith.extui %323 : vector<8x256xi1> to vector<8x256xi32>
    %cst_90 = arith.constant dense<0> : vector<8xi32>
    %325 = vector.multi_reduction <add>, %324, %cst_90 [1] : vector<8x256xi32> to vector<8xi32>
    %326 = vector.shape_cast %325 : vector<8xi32> to vector<8x1xi32>
    %c128_i32_91 = arith.constant 128 : i32
    %327 = vector.broadcast %c128_i32_91 : i32 to vector<8x1xi32>
    %328 = arith.cmpi sge, %326, %327 : vector<8x1xi32>
    %329 = arith.select %328, %319, %315 : vector<8x1xi1>, vector<8x1xi32>
    %c23_i32 = arith.constant 23 : i32
    %c31_i32_92 = arith.constant 31 : i32
    %330 = arith.subi %c31_i32_92, %c23_i32 : i32
    %c1_i32_93 = arith.constant 1 : i32
    %331 = arith.shli %c1_i32_93, %330 : i32
    %332 = vector.broadcast %331 : i32 to vector<8x1xi32>
    %333 = arith.ori %329, %332 : vector<8x1xi32>
    %334 = vector.broadcast %c-2147483648_i32 : i32 to vector<8x1xi32>
    %335 = arith.xori %333, %334 : vector<8x1xi32>
    %336 = vector.broadcast %335 : vector<8x1xi32> to vector<8x256xi32>
    %337 = arith.cmpi sge, %6, %336 : vector<8x256xi32>
    %338 = arith.extui %337 : vector<8x256xi1> to vector<8x256xi32>
    %cst_94 = arith.constant dense<0> : vector<8xi32>
    %339 = vector.multi_reduction <add>, %338, %cst_94 [1] : vector<8x256xi32> to vector<8xi32>
    %340 = vector.shape_cast %339 : vector<8xi32> to vector<8x1xi32>
    %c128_i32_95 = arith.constant 128 : i32
    %341 = vector.broadcast %c128_i32_95 : i32 to vector<8x1xi32>
    %342 = arith.cmpi sge, %340, %341 : vector<8x1xi32>
    %343 = arith.select %342, %333, %329 : vector<8x1xi1>, vector<8x1xi32>
    %c24_i32 = arith.constant 24 : i32
    %c31_i32_96 = arith.constant 31 : i32
    %344 = arith.subi %c31_i32_96, %c24_i32 : i32
    %c1_i32_97 = arith.constant 1 : i32
    %345 = arith.shli %c1_i32_97, %344 : i32
    %346 = vector.broadcast %345 : i32 to vector<8x1xi32>
    %347 = arith.ori %343, %346 : vector<8x1xi32>
    %348 = vector.broadcast %c-2147483648_i32 : i32 to vector<8x1xi32>
    %349 = arith.xori %347, %348 : vector<8x1xi32>
    %350 = vector.broadcast %349 : vector<8x1xi32> to vector<8x256xi32>
    %351 = arith.cmpi sge, %6, %350 : vector<8x256xi32>
    %352 = arith.extui %351 : vector<8x256xi1> to vector<8x256xi32>
    %cst_98 = arith.constant dense<0> : vector<8xi32>
    %353 = vector.multi_reduction <add>, %352, %cst_98 [1] : vector<8x256xi32> to vector<8xi32>
    %354 = vector.shape_cast %353 : vector<8xi32> to vector<8x1xi32>
    %c128_i32_99 = arith.constant 128 : i32
    %355 = vector.broadcast %c128_i32_99 : i32 to vector<8x1xi32>
    %356 = arith.cmpi sge, %354, %355 : vector<8x1xi32>
    %357 = arith.select %356, %347, %343 : vector<8x1xi1>, vector<8x1xi32>
    %c25_i32 = arith.constant 25 : i32
    %c31_i32_100 = arith.constant 31 : i32
    %358 = arith.subi %c31_i32_100, %c25_i32 : i32
    %c1_i32_101 = arith.constant 1 : i32
    %359 = arith.shli %c1_i32_101, %358 : i32
    %360 = vector.broadcast %359 : i32 to vector<8x1xi32>
    %361 = arith.ori %357, %360 : vector<8x1xi32>
    %362 = vector.broadcast %c-2147483648_i32 : i32 to vector<8x1xi32>
    %363 = arith.xori %361, %362 : vector<8x1xi32>
    %364 = vector.broadcast %363 : vector<8x1xi32> to vector<8x256xi32>
    %365 = arith.cmpi sge, %6, %364 : vector<8x256xi32>
    %366 = arith.extui %365 : vector<8x256xi1> to vector<8x256xi32>
    %cst_102 = arith.constant dense<0> : vector<8xi32>
    %367 = vector.multi_reduction <add>, %366, %cst_102 [1] : vector<8x256xi32> to vector<8xi32>
    %368 = vector.shape_cast %367 : vector<8xi32> to vector<8x1xi32>
    %c128_i32_103 = arith.constant 128 : i32
    %369 = vector.broadcast %c128_i32_103 : i32 to vector<8x1xi32>
    %370 = arith.cmpi sge, %368, %369 : vector<8x1xi32>
    %371 = arith.select %370, %361, %357 : vector<8x1xi1>, vector<8x1xi32>
    %c26_i32 = arith.constant 26 : i32
    %c31_i32_104 = arith.constant 31 : i32
    %372 = arith.subi %c31_i32_104, %c26_i32 : i32
    %c1_i32_105 = arith.constant 1 : i32
    %373 = arith.shli %c1_i32_105, %372 : i32
    %374 = vector.broadcast %373 : i32 to vector<8x1xi32>
    %375 = arith.ori %371, %374 : vector<8x1xi32>
    %376 = vector.broadcast %c-2147483648_i32 : i32 to vector<8x1xi32>
    %377 = arith.xori %375, %376 : vector<8x1xi32>
    %378 = vector.broadcast %377 : vector<8x1xi32> to vector<8x256xi32>
    %379 = arith.cmpi sge, %6, %378 : vector<8x256xi32>
    %380 = arith.extui %379 : vector<8x256xi1> to vector<8x256xi32>
    %cst_106 = arith.constant dense<0> : vector<8xi32>
    %381 = vector.multi_reduction <add>, %380, %cst_106 [1] : vector<8x256xi32> to vector<8xi32>
    %382 = vector.shape_cast %381 : vector<8xi32> to vector<8x1xi32>
    %c128_i32_107 = arith.constant 128 : i32
    %383 = vector.broadcast %c128_i32_107 : i32 to vector<8x1xi32>
    %384 = arith.cmpi sge, %382, %383 : vector<8x1xi32>
    %385 = arith.select %384, %375, %371 : vector<8x1xi1>, vector<8x1xi32>
    %c27_i32 = arith.constant 27 : i32
    %c31_i32_108 = arith.constant 31 : i32
    %386 = arith.subi %c31_i32_108, %c27_i32 : i32
    %c1_i32_109 = arith.constant 1 : i32
    %387 = arith.shli %c1_i32_109, %386 : i32
    %388 = vector.broadcast %387 : i32 to vector<8x1xi32>
    %389 = arith.ori %385, %388 : vector<8x1xi32>
    %390 = vector.broadcast %c-2147483648_i32 : i32 to vector<8x1xi32>
    %391 = arith.xori %389, %390 : vector<8x1xi32>
    %392 = vector.broadcast %391 : vector<8x1xi32> to vector<8x256xi32>
    %393 = arith.cmpi sge, %6, %392 : vector<8x256xi32>
    %394 = arith.extui %393 : vector<8x256xi1> to vector<8x256xi32>
    %cst_110 = arith.constant dense<0> : vector<8xi32>
    %395 = vector.multi_reduction <add>, %394, %cst_110 [1] : vector<8x256xi32> to vector<8xi32>
    %396 = vector.shape_cast %395 : vector<8xi32> to vector<8x1xi32>
    %c128_i32_111 = arith.constant 128 : i32
    %397 = vector.broadcast %c128_i32_111 : i32 to vector<8x1xi32>
    %398 = arith.cmpi sge, %396, %397 : vector<8x1xi32>
    %399 = arith.select %398, %389, %385 : vector<8x1xi1>, vector<8x1xi32>
    %c28_i32 = arith.constant 28 : i32
    %c31_i32_112 = arith.constant 31 : i32
    %400 = arith.subi %c31_i32_112, %c28_i32 : i32
    %c1_i32_113 = arith.constant 1 : i32
    %401 = arith.shli %c1_i32_113, %400 : i32
    %402 = vector.broadcast %401 : i32 to vector<8x1xi32>
    %403 = arith.ori %399, %402 : vector<8x1xi32>
    %404 = vector.broadcast %c-2147483648_i32 : i32 to vector<8x1xi32>
    %405 = arith.xori %403, %404 : vector<8x1xi32>
    %406 = vector.broadcast %405 : vector<8x1xi32> to vector<8x256xi32>
    %407 = arith.cmpi sge, %6, %406 : vector<8x256xi32>
    %408 = arith.extui %407 : vector<8x256xi1> to vector<8x256xi32>
    %cst_114 = arith.constant dense<0> : vector<8xi32>
    %409 = vector.multi_reduction <add>, %408, %cst_114 [1] : vector<8x256xi32> to vector<8xi32>
    %410 = vector.shape_cast %409 : vector<8xi32> to vector<8x1xi32>
    %c128_i32_115 = arith.constant 128 : i32
    %411 = vector.broadcast %c128_i32_115 : i32 to vector<8x1xi32>
    %412 = arith.cmpi sge, %410, %411 : vector<8x1xi32>
    %413 = arith.select %412, %403, %399 : vector<8x1xi1>, vector<8x1xi32>
    %c29_i32 = arith.constant 29 : i32
    %c31_i32_116 = arith.constant 31 : i32
    %414 = arith.subi %c31_i32_116, %c29_i32 : i32
    %c1_i32_117 = arith.constant 1 : i32
    %415 = arith.shli %c1_i32_117, %414 : i32
    %416 = vector.broadcast %415 : i32 to vector<8x1xi32>
    %417 = arith.ori %413, %416 : vector<8x1xi32>
    %418 = vector.broadcast %c-2147483648_i32 : i32 to vector<8x1xi32>
    %419 = arith.xori %417, %418 : vector<8x1xi32>
    %420 = vector.broadcast %419 : vector<8x1xi32> to vector<8x256xi32>
    %421 = arith.cmpi sge, %6, %420 : vector<8x256xi32>
    %422 = arith.extui %421 : vector<8x256xi1> to vector<8x256xi32>
    %cst_118 = arith.constant dense<0> : vector<8xi32>
    %423 = vector.multi_reduction <add>, %422, %cst_118 [1] : vector<8x256xi32> to vector<8xi32>
    %424 = vector.shape_cast %423 : vector<8xi32> to vector<8x1xi32>
    %c128_i32_119 = arith.constant 128 : i32
    %425 = vector.broadcast %c128_i32_119 : i32 to vector<8x1xi32>
    %426 = arith.cmpi sge, %424, %425 : vector<8x1xi32>
    %427 = arith.select %426, %417, %413 : vector<8x1xi1>, vector<8x1xi32>
    %c30_i32 = arith.constant 30 : i32
    %c31_i32_120 = arith.constant 31 : i32
    %428 = arith.subi %c31_i32_120, %c30_i32 : i32
    %c1_i32_121 = arith.constant 1 : i32
    %429 = arith.shli %c1_i32_121, %428 : i32
    %430 = vector.broadcast %429 : i32 to vector<8x1xi32>
    %431 = arith.ori %427, %430 : vector<8x1xi32>
    %432 = vector.broadcast %c-2147483648_i32 : i32 to vector<8x1xi32>
    %433 = arith.xori %431, %432 : vector<8x1xi32>
    %434 = vector.broadcast %433 : vector<8x1xi32> to vector<8x256xi32>
    %435 = arith.cmpi sge, %6, %434 : vector<8x256xi32>
    %436 = arith.extui %435 : vector<8x256xi1> to vector<8x256xi32>
    %cst_122 = arith.constant dense<0> : vector<8xi32>
    %437 = vector.multi_reduction <add>, %436, %cst_122 [1] : vector<8x256xi32> to vector<8xi32>
    %438 = vector.shape_cast %437 : vector<8xi32> to vector<8x1xi32>
    %c128_i32_123 = arith.constant 128 : i32
    %439 = vector.broadcast %c128_i32_123 : i32 to vector<8x1xi32>
    %440 = arith.cmpi sge, %438, %439 : vector<8x1xi32>
    %441 = arith.select %440, %431, %427 : vector<8x1xi1>, vector<8x1xi32>
    %c31_i32_124 = arith.constant 31 : i32
    %c31_i32_125 = arith.constant 31 : i32
    %442 = arith.subi %c31_i32_125, %c31_i32_124 : i32
    %c1_i32_126 = arith.constant 1 : i32
    %443 = arith.shli %c1_i32_126, %442 : i32
    %444 = vector.broadcast %443 : i32 to vector<8x1xi32>
    %445 = arith.ori %441, %444 : vector<8x1xi32>
    %446 = vector.broadcast %c-2147483648_i32 : i32 to vector<8x1xi32>
    %447 = arith.xori %445, %446 : vector<8x1xi32>
    %448 = vector.broadcast %447 : vector<8x1xi32> to vector<8x256xi32>
    %449 = arith.cmpi sge, %6, %448 : vector<8x256xi32>
    %450 = arith.extui %449 : vector<8x256xi1> to vector<8x256xi32>
    %cst_127 = arith.constant dense<0> : vector<8xi32>
    %451 = vector.multi_reduction <add>, %450, %cst_127 [1] : vector<8x256xi32> to vector<8xi32>
    %452 = vector.shape_cast %451 : vector<8xi32> to vector<8x1xi32>
    %c128_i32_128 = arith.constant 128 : i32
    %453 = vector.broadcast %c128_i32_128 : i32 to vector<8x1xi32>
    %454 = arith.cmpi sge, %452, %453 : vector<8x1xi32>
    %455 = arith.select %454, %445, %441 : vector<8x1xi1>, vector<8x1xi32>
    %c32_i32 = arith.constant 32 : i32
    %c-2147483648_i32_129 = arith.constant -2147483648 : i32
    %456 = vector.broadcast %c-2147483648_i32_129 : i32 to vector<8x1xi32>
    %457 = arith.xori %455, %456 : vector<8x1xi32>
    %c0_i32_130 = arith.constant 0 : i32
    %458 = vector.broadcast %c0_i32_130 : i32 to vector<8x1xi32>
    %459 = arith.cmpi sge, %457, %458 : vector<8x1xi32>
    %c2147483647_i32_131 = arith.constant 2147483647 : i32
    %460 = vector.broadcast %c2147483647_i32_131 : i32 to vector<8x1xi32>
    %461 = arith.xori %457, %460 : vector<8x1xi32>
    %462 = arith.select %459, %457, %461 : vector<8x1xi1>, vector<8x1xi32>
    %463 = tpu.bitcast %462 : vector<8x1xi32> -> vector<8x1xf32>
    %c0_132 = arith.constant 0 : index
    %c0_133 = arith.constant 0 : index
    %464 = vector.load %arg1[%c0_132, %c0_133] : memref<8x256xf32, #tpu.memory_space<vmem>>, vector<8x256xf32>
    %465 = vector.broadcast %463 : vector<8x1xf32> to vector<8x256xf32>
    %466 = arith.cmpf oge, %464, %465 : vector<8x256xf32>
    %cst_134 = arith.constant 0.000000e+00 : f32
    %467 = vector.broadcast %cst_134 : f32 to vector<8x256xf32>
    %468 = arith.select %466, %464, %467 : vector<8x256xi1>, vector<8x256xf32>
    %c0_135 = arith.constant 0 : index
    %c0_136 = arith.constant 0 : index
    %469 = vector.load %arg2[%c0_135, %c0_136] : memref<8x256xf32, #tpu.memory_space<vmem>>, vector<8x256xf32>
    tpu.vector_store %arg2[%c0_135, %c0_136], %468 {strides = array<i32>} : memref<8x256xf32, #tpu.memory_space<vmem>>, vector<8x256xf32>,
    return
  }
  func.func @transform_0(%arg0: i32) -> (i32, i32) {
    %c0_i32 = arith.constant 0 : i32
    %c0_i32_0 = arith.constant 0 : i32
    return %arg0, %c0_i32 : i32, i32
  }
  func.func @transform_1(%arg0: i32) -> (i32, i32) {
    %c0_i32 = arith.constant 0 : i32
    %c0_i32_0 = arith.constant 0 : i32
    return %arg0, %c0_i32 : i32, i32
  }
}

</mosaic_0001>

<llo_original>
// kernel: tpu_custom_call.1
$region0: #{tpu_custom_call.1}
  #allocation0 [shape = 'u32[]', space=smem, size = 0x4, offset = 0x4, fixed_abs, tag = 'smem constant byte address 0x4 - core index']
  #allocation1 [shape = 'u32[144,128]{1,0:T(1,128)}', space=vmem, size = 0x12000, scoped, tag = 'internal scratch']
  %s0 = inlined_call_operand.hbm [shape: f32[8,256], index: 0, kind: input, shape index: {}]
  %s1 = inlined_call_operand.hbm [shape: f32[8,256], index: 1, kind: output, shape index: {}]
  %s2 = sld [smem:[#allocation0]]
  $region18: #{tpu_custom_call.1} parent=0
    _
  %s4 = ssub.s32 1, %s2
  %s5 = scalar_select 0, %s4, %s2
  $region1: #{tpu_custom_call.1} parent=0
    #allocation2 [shape = 'u8[8192]{0}', space=vmem, size = 0x2000, scoped, tag = 'input window, operand 0, single buffered']
    #allocation3 [shape = 's32[1]{0}', space=sflag, size = 0x4, scoped, tag = 'scoped memory for tpu_custom_call.1']
    #allocation4 [shape = 's32[1]{0}', space=sflag, size = 0x4, scoped, tag = 'scoped memory for tpu_custom_call.1']
    #allocation5 [shape = 'u8[8192]{0}', space=vmem, size = 0x2000, scoped, tag = 'output window, operand 0, single buffered']
    %6 = vsyncpa [#allocation3], 0
    %7 = vsyncpa [#allocation4], 0
    // Predicated region
    $region2: #{tpu_custom_call.1} parent=1 // pred_check
      _
    $region3: #{tpu_custom_call.1} parent=1 // pred_check_branch
      %9 = sbr.rel (0) target = $region5
    $region4: #{tpu_custom_call.1} parent=1 // pred_region
      %s11 = ssub.s32 256, 256
      %12 = vsyncadd [#allocation3], %s11
      %s14 = sshll.u32 [#allocation2], 4
      %s15 = int_to_ptr.vmem [resolvable:$true] %s14
      %17 = dma.hbm_to_vmem [thread:$0]  %s0, 256, %s15, [#allocation3]
    $region5: #{tpu_custom_call.1} parent=1 // pred_fallthru
      _
    // Predicated region
    $region6: #{tpu_custom_call.1} parent=1 // pred_check
      _
    $region7: #{tpu_custom_call.1} parent=1 // pred_check_branch
      %19 = sbr.rel (0) target = $region9
    $region8: #{tpu_custom_call.1} parent=1 // pred_region
      %20 = dma.done [#allocation3], 256
    $region9: #{tpu_custom_call.1} parent=1 // pred_fallthru
      _
    %v21 = vld [vmem:[#allocation2] sm:$0xff]
    %v22 = vld [vmem:[#allocation2 + $0x8] sm:$0xff]
    %vm25 = vcmp.ge.s32.totalorder %v21, 0
    %vm26 = vcmp.ge.s32.totalorder %v22, 0
    %v27 = vxor.u32 %v21, 2147483647
    %v28 = vxor.u32 %v22, 2147483647
    %v29 = vsel %vm25, %v21, %v27
    %v30 = vsel %vm26, %v22, %v28
    %vm31 = vcmp.ge.s32.totalorder %v29, 0
    %vm32 = vcmp.ge.s32.totalorder %v30, 0
    %v33 = vsel %vm31, 1, 0
    %v34 = vsel %vm32, 1, 0
    %v35 = vadd.s32 %v33, %v34
    %v36 = vand.u32 %v35, 65535
    %v37 = vshrl.u32 %v35, 16
    %v38 = vcvt.s32.f32 %v36
    %v39 = vcvt.s32.f32 %v37
    %40 = vadd.xlane.f32.xlu0 %v38
    %v41 = vpop.xlane.xlu0 %40
    %42 = vadd.xlane.f32.xlu0 %v39
    %v43 = vpop.xlane.xlu0 %42
    %v44 = vcvt.f32.s32 %v41
    %v45 = vcvt.f32.s32 %v43
    %v46 = vshll.u32 %v45, 16
    %v47 = vadd.s32 %v46, %v44
    %vm48 = vcmp.ge.s32.totalorder %v47, 128
    %v49 = vsel %vm48, 2147483648, 0
    %v50 = vor.u32 %v49, 1073741824
    %v51 = vxor.u32 %v50, 2147483648
    %vm52 = vcmp.ge.s32.totalorder %v29, %v51
    %vm53 = vcmp.ge.s32.totalorder %v30, %v51
    %v54 = vsel %vm52, 1, 0
    %v55 = vsel %vm53, 1, 0
    %v56 = vadd.s32 %v54, %v55
    %v57 = vand.u32 %v56, 65535
    %v58 = vshrl.u32 %v56, 16
    %v59 = vcvt.s32.f32 %v57
    %v60 = vcvt.s32.f32 %v58
    %61 = vadd.xlane.f32.xlu0 %v59
    %v62 = vpop.xlane.xlu0 %61
    %63 = vadd.xlane.f32.xlu0 %v60
    %v64 = vpop.xlane.xlu0 %63
    %v65 = vcvt.f32.s32 %v62
    %v66 = vcvt.f32.s32 %v64
    %v67 = vshll.u32 %v66, 16
    %v68 = vadd.s32 %v67, %v65
    %vm69 = vcmp.ge.s32.totalorder %v68, 128
    %v70 = vsel %vm69, %v50, %v49
    %v71 = vor.u32 %v70, 536870912
    %v72 = vxor.u32 %v71, 2147483648
    %vm73 = vcmp.ge.s32.totalorder %v29, %v72
    %vm74 = vcmp.ge.s32.totalorder %v30, %v72
    %v75 = vsel %vm73, 1, 0
    %v76 = vsel %vm74, 1, 0
    %v77 = vadd.s32 %v75, %v76
    %v78 = vand.u32 %v77, 65535
    %v79 = vshrl.u32 %v77, 16
    %v80 = vcvt.s32.f32 %v78
    %v81 = vcvt.s32.f32 %v79
    %82 = vadd.xlane.f32.xlu0 %v80
    %v83 = vpop.xlane.xlu0 %82
    %84 = vadd.xlane.f32.xlu0 %v81
    %v85 = vpop.xlane.xlu0 %84
    %v86 = vcvt.f32.s32 %v83
    %v87 = vcvt.f32.s32 %v85
    %v88 = vshll.u32 %v87, 16
    %v89 = vadd.s32 %v88, %v86
    %vm90 = vcmp.ge.s32.totalorder %v89, 128
    %v91 = vsel %vm90, %v71, %v70
    %v92 = vor.u32 %v91, 268435456
    %v93 = vxor.u32 %v92, 2147483648
    %vm94 = vcmp.ge.s32.totalorder %v29, %v93
    %vm95 = vcmp.ge.s32.totalorder %v30, %v93
    %v96 = vsel %vm94, 1, 0
    %v97 = vsel %vm95, 1, 0
    %v98 = vadd.s32 %v96, %v97
    %v99 = vand.u32 %v98, 65535
    %v100 = vshrl.u32 %v98, 16
    %v101 = vcvt.s32.f32 %v99
    %v102 = vcvt.s32.f32 %v100
    %103 = vadd.xlane.f32.xlu0 %v101
    %v104 = vpop.xlane.xlu0 %103
    %105 = vadd.xlane.f32.xlu0 %v102
    %v106 = vpop.xlane.xlu0 %105
    %v107 = vcvt.f32.s32 %v104
    %v108 = vcvt.f32.s32 %v106
    %v109 = vshll.u32 %v108, 16
    %v110 = vadd.s32 %v109, %v107
    %vm111 = vcmp.ge.s32.totalorder %v110, 128
    %v112 = vsel %vm111, %v92, %v91
    %v113 = vor.u32 %v112, 134217728
    %v114 = vxor.u32 %v113, 2147483648
    %vm115 = vcmp.ge.s32.totalorder %v29, %v114
    %vm116 = vcmp.ge.s32.totalorder %v30, %v114
    %v117 = vsel %vm115, 1, 0
    %v118 = vsel %vm116, 1, 0
    %v119 = vadd.s32 %v117, %v118
    %v120 = vand.u32 %v119, 65535
    %v121 = vshrl.u32 %v119, 16
    %v122 = vcvt.s32.f32 %v120
    %v123 = vcvt.s32.f32 %v121
    %124 = vadd.xlane.f32.xlu0 %v122
    %v125 = vpop.xlane.xlu0 %124
    %126 = vadd.xlane.f32.xlu0 %v123
    %v127 = vpop.xlane.xlu0 %126
    %v128 = vcvt.f32.s32 %v125
    %v129 = vcvt.f32.s32 %v127
    %v130 = vshll.u32 %v129, 16
    %v131 = vadd.s32 %v130, %v128
    %vm132 = vcmp.ge.s32.totalorder %v131, 128
    %v133 = vsel %vm132, %v113, %v112
    %v134 = vor.u32 %v133, 67108864
    %v135 = vxor.u32 %v134, 2147483648
    %vm136 = vcmp.ge.s32.totalorder %v29, %v135
    %vm137 = vcmp.ge.s32.totalorder %v30, %v135
    %v138 = vsel %vm136, 1, 0
    %v139 = vsel %vm137, 1, 0
    %v140 = vadd.s32 %v138, %v139
    %v141 = vand.u32 %v140, 65535
    %v142 = vshrl.u32 %v140, 16
    %v143 = vcvt.s32.f32 %v141
    %v144 = vcvt.s32.f32 %v142
    %145 = vadd.xlane.f32.xlu0 %v143
    %v146 = vpop.xlane.xlu0 %145
    %147 = vadd.xlane.f32.xlu0 %v144
    %v148 = vpop.xlane.xlu0 %147
    %v149 = vcvt.f32.s32 %v146
    %v150 = vcvt.f32.s32 %v148
    %v151 = vshll.u32 %v150, 16
    %v152 = vadd.s32 %v151, %v149
    %vm153 = vcmp.ge.s32.totalorder %v152, 128
    %v154 = vsel %vm153, %v134, %v133
    %v155 = vor.u32 %v154, 33554432
    %v156 = vxor.u32 %v155, 2147483648
    %vm157 = vcmp.ge.s32.totalorder %v29, %v156
    %vm158 = vcmp.ge.s32.totalorder %v30, %v156
    %v159 = vsel %vm157, 1, 0
    %v160 = vsel %vm158, 1, 0
    %v161 = vadd.s32 %v159, %v160
    %v162 = vand.u32 %v161, 65535
    %v163 = vshrl.u32 %v161, 16
    %v164 = vcvt.s32.f32 %v162
    %v165 = vcvt.s32.f32 %v163
    %166 = vadd.xlane.f32.xlu0 %v164
    %v167 = vpop.xlane.xlu0 %166
    %168 = vadd.xlane.f32.xlu0 %v165
    %v169 = vpop.xlane.xlu0 %168
    %v170 = vcvt.f32.s32 %v167
    %v171 = vcvt.f32.s32 %v169
    %v172 = vshll.u32 %v171, 16
    %v173 = vadd.s32 %v172, %v170
    %vm174 = vcmp.ge.s32.totalorder %v173, 128
    %v175 = vsel %vm174, %v155, %v154
    %v176 = vor.u32 %v175, 16777216
    %v177 = vxor.u32 %v176, 2147483648
    %vm178 = vcmp.ge.s32.totalorder %v29, %v177
    %vm179 = vcmp.ge.s32.totalorder %v30, %v177
    %v180 = vsel %vm178, 1, 0
    %v181 = vsel %vm179, 1, 0
    %v182 = vadd.s32 %v180, %v181
    %v183 = vand.u32 %v182, 65535
    %v184 = vshrl.u32 %v182, 16
    %v185 = vcvt.s32.f32 %v183
    %v186 = vcvt.s32.f32 %v184
    %187 = vadd.xlane.f32.xlu0 %v185
    %v188 = vpop.xlane.xlu0 %187
    %189 = vadd.xlane.f32.xlu0 %v186
    %v190 = vpop.xlane.xlu0 %189
    %v191 = vcvt.f32.s32 %v188
    %v192 = vcvt.f32.s32 %v190
    %v193 = vshll.u32 %v192, 16
    %v194 = vadd.s32 %v193, %v191
    %vm195 = vcmp.ge.s32.totalorder %v194, 128
    %v196 = vsel %vm195, %v176, %v175
    %v197 = vor.u32 %v196, 8388608
    %v198 = vxor.u32 %v197, 2147483648
    %vm199 = vcmp.ge.s32.totalorder %v29, %v198
    %vm200 = vcmp.ge.s32.totalorder %v30, %v198
    %v201 = vsel %vm199, 1, 0
    %v202 = vsel %vm200, 1, 0
    %v203 = vadd.s32 %v201, %v202
    %v204 = vand.u32 %v203, 65535
    %v205 = vshrl.u32 %v203, 16
    %v206 = vcvt.s32.f32 %v204
    %v207 = vcvt.s32.f32 %v205
    %208 = vadd.xlane.f32.xlu0 %v206
    %v209 = vpop.xlane.xlu0 %208
    %210 = vadd.xlane.f32.xlu0 %v207
    %v211 = vpop.xlane.xlu0 %210
    %v212 = vcvt.f32.s32 %v209
    %v213 = vcvt.f32.s32 %v211
    %v214 = vshll.u32 %v213, 16
    %v215 = vadd.s32 %v214, %v212
    %vm216 = vcmp.ge.s32.totalorder %v215, 128
    %v217 = vsel %vm216, %v197, %v196
    %v218 = vor.u32 %v217, 4194304
    %v219 = vxor.u32 %v218, 2147483648
    %vm220 = vcmp.ge.s32.totalorder %v29, %v219
    %vm221 = vcmp.ge.s32.totalorder %v30, %v219
    %v222 = vsel %vm220, 1, 0
    %v223 = vsel %vm221, 1, 0
    %v224 = vadd.s32 %v222, %v223
    %v225 = vand.u32 %v224, 65535
    %v226 = vshrl.u32 %v224, 16
    %v227 = vcvt.s32.f32 %v225
    %v228 = vcvt.s32.f32 %v226
    %229 = vadd.xlane.f32.xlu0 %v227
    %v230 = vpop.xlane.xlu0 %229
    %231 = vadd.xlane.f32.xlu0 %v228
    %v232 = vpop.xlane.xlu0 %231
    %v233 = vcvt.f32.s32 %v230
    %v234 = vcvt.f32.s32 %v232
    %v235 = vshll.u32 %v234, 16
    %v236 = vadd.s32 %v235, %v233
    %vm237 = vcmp.ge.s32.totalorder %v236, 128
    %v238 = vsel %vm237, %v218, %v217
    %v239 = vor.u32 %v238, 2097152
    %v240 = vxor.u32 %v239, 2147483648
    %vm241 = vcmp.ge.s32.totalorder %v29, %v240
    %vm242 = vcmp.ge.s32.totalorder %v30, %v240
    %v243 = vsel %vm241, 1, 0
    %v244 = vsel %vm242, 1, 0
    %v245 = vadd.s32 %v243, %v244
    %v246 = vand.u32 %v245, 65535
    %v247 = vshrl.u32 %v245, 16
    %v248 = vcvt.s32.f32 %v246
    %v249 = vcvt.s32.f32 %v247
    %250 = vadd.xlane.f32.xlu0 %v248
    %v251 = vpop.xlane.xlu0 %250
    %252 = vadd.xlane.f32.xlu0 %v249
    %v253 = vpop.xlane.xlu0 %252
    %v254 = vcvt.f32.s32 %v251
    %v255 = vcvt.f32.s32 %v253
    %v256 = vshll.u32 %v255, 16
    %v257 = vadd.s32 %v256, %v254
    %vm258 = vcmp.ge.s32.totalorder %v257, 128
    %v259 = vsel %vm258, %v239, %v238
    %v260 = vor.u32 %v259, 1048576
    %v261 = vxor.u32 %v260, 2147483648
    %vm262 = vcmp.ge.s32.totalorder %v29, %v261
    %vm263 = vcmp.ge.s32.totalorder %v30, %v261
    %v264 = vsel %vm262, 1, 0
    %v265 = vsel %vm263, 1, 0
    %v266 = vadd.s32 %v264, %v265
    %v267 = vand.u32 %v266, 65535
    %v268 = vshrl.u32 %v266, 16
    %v269 = vcvt.s32.f32 %v267
    %v270 = vcvt.s32.f32 %v268
    %271 = vadd.xlane.f32.xlu0 %v269
    %v272 = vpop.xlane.xlu0 %271
    %273 = vadd.xlane.f32.xlu0 %v270
    %v274 = vpop.xlane.xlu0 %273
    %v275 = vcvt.f32.s32 %v272
    %v276 = vcvt.f32.s32 %v274
    %v277 = vshll.u32 %v276, 16
    %v278 = vadd.s32 %v277, %v275
    %vm279 = vcmp.ge.s32.totalorder %v278, 128
    %v280 = vsel %vm279, %v260, %v259
    %v281 = vor.u32 %v280, 524288
    %v282 = vxor.u32 %v281, 2147483648
    %vm283 = vcmp.ge.s32.totalorder %v29, %v282
    %vm284 = vcmp.ge.s32.totalorder %v30, %v282
    %v285 = vsel %vm283, 1, 0
    %v286 = vsel %vm284, 1, 0
    %v287 = vadd.s32 %v285, %v286
    %v288 = vand.u32 %v287, 65535
    %v289 = vshrl.u32 %v287, 16
    %v290 = vcvt.s32.f32 %v288
    %v291 = vcvt.s32.f32 %v289
    %292 = vadd.xlane.f32.xlu0 %v290
    %v293 = vpop.xlane.xlu0 %292
    %294 = vadd.xlane.f32.xlu0 %v291
    %v295 = vpop.xlane.xlu0 %294
    %v296 = vcvt.f32.s32 %v293
    %v297 = vcvt.f32.s32 %v295
    %v298 = vshll.u32 %v297, 16
    %v299 = vadd.s32 %v298, %v296
    %vm300 = vcmp.ge.s32.totalorder %v299, 128
    %v301 = vsel %vm300, %v281, %v280
    %v302 = vor.u32 %v301, 262144
    %v303 = vxor.u32 %v302, 2147483648
    %vm304 = vcmp.ge.s32.totalorder %v29, %v303
    %vm305 = vcmp.ge.s32.totalorder %v30, %v303
    %v306 = vsel %vm304, 1, 0
    %v307 = vsel %vm305, 1, 0
    %v308 = vadd.s32 %v306, %v307
    %v309 = vand.u32 %v308, 65535
    %v310 = vshrl.u32 %v308, 16
    %v311 = vcvt.s32.f32 %v309
    %v312 = vcvt.s32.f32 %v310
    %313 = vadd.xlane.f32.xlu0 %v311
    %v314 = vpop.xlane.xlu0 %313
    %315 = vadd.xlane.f32.xlu0 %v312
    %v316 = vpop.xlane.xlu0 %315
    %v317 = vcvt.f32.s32 %v314
    %v318 = vcvt.f32.s32 %v316
    %v319 = vshll.u32 %v318, 16
    %v320 = vadd.s32 %v319, %v317
    %vm321 = vcmp.ge.s32.totalorder %v320, 128
    %v322 = vsel %vm321, %v302, %v301
    %v323 = vor.u32 %v322, 131072
    %v324 = vxor.u32 %v323, 2147483648
    %vm325 = vcmp.ge.s32.totalorder %v29, %v324
    %vm326 = vcmp.ge.s32.totalorder %v30, %v324
    %v327 = vsel %vm325, 1, 0
    %v328 = vsel %vm326, 1, 0
    %v329 = vadd.s32 %v327, %v328
    %v330 = vand.u32 %v329, 65535
    %v331 = vshrl.u32 %v329, 16
    %v332 = vcvt.s32.f32 %v330
    %v333 = vcvt.s32.f32 %v331
    %334 = vadd.xlane.f32.xlu0 %v332
    %v335 = vpop.xlane.xlu0 %334
    %336 = vadd.xlane.f32.xlu0 %v333
    %v337 = vpop.xlane.xlu0 %336
    %v338 = vcvt.f32.s32 %v335
    %v339 = vcvt.f32.s32 %v337
    %v340 = vshll.u32 %v339, 16
    %v341 = vadd.s32 %v340, %v338
    %vm342 = vcmp.ge.s32.totalorder %v341, 128
    %v343 = vsel %vm342, %v323, %v322
    %v344 = vor.u32 %v343, 65536
    %v345 = vxor.u32 %v344, 2147483648
    %vm346 = vcmp.ge.s32.totalorder %v29, %v345
    %vm347 = vcmp.ge.s32.totalorder %v30, %v345
    %v348 = vsel %vm346, 1, 0
    %v349 = vsel %vm347, 1, 0
    %v350 = vadd.s32 %v348, %v349
    %v351 = vand.u32 %v350, 65535
    %v352 = vshrl.u32 %v350, 16
    %v353 = vcvt.s32.f32 %v351
    %v354 = vcvt.s32.f32 %v352
    %355 = vadd.xlane.f32.xlu0 %v353
    %v356 = vpop.xlane.xlu0 %355
    %357 = vadd.xlane.f32.xlu0 %v354
    %v358 = vpop.xlane.xlu0 %357
    %v359 = vcvt.f32.s32 %v356
    %v360 = vcvt.f32.s32 %v358
    %v361 = vshll.u32 %v360, 16
    %v362 = vadd.s32 %v361, %v359
    %vm363 = vcmp.ge.s32.totalorder %v362, 128
    %v364 = vsel %vm363, %v344, %v343
    %v365 = vor.u32 %v364, 32768
    %v366 = vxor.u32 %v365, 2147483648
    %vm367 = vcmp.ge.s32.totalorder %v29, %v366
    %vm368 = vcmp.ge.s32.totalorder %v30, %v366
    %v369 = vsel %vm367, 1, 0
    %v370 = vsel %vm368, 1, 0
    %v371 = vadd.s32 %v369, %v370
    %v372 = vand.u32 %v371, 65535
    %v373 = vshrl.u32 %v371, 16
    %v374 = vcvt.s32.f32 %v372
    %v375 = vcvt.s32.f32 %v373
    %376 = vadd.xlane.f32.xlu0 %v374
    %v377 = vpop.xlane.xlu0 %376
    %378 = vadd.xlane.f32.xlu0 %v375
    %v379 = vpop.xlane.xlu0 %378
    %v380 = vcvt.f32.s32 %v377
    %v381 = vcvt.f32.s32 %v379
    %v382 = vshll.u32 %v381, 16
    %v383 = vadd.s32 %v382, %v380
    %vm384 = vcmp.ge.s32.totalorder %v383, 128
    %v385 = vsel %vm384, %v365, %v364
    %v386 = vor.u32 %v385, 16384
    %v387 = vxor.u32 %v386, 2147483648
    %vm388 = vcmp.ge.s32.totalorder %v29, %v387
    %vm389 = vcmp.ge.s32.totalorder %v30, %v387
    %v390 = vsel %vm388, 1, 0
    %v391 = vsel %vm389, 1, 0
    %v392 = vadd.s32 %v390, %v391
    %v393 = vand.u32 %v392, 65535
    %v394 = vshrl.u32 %v392, 16
    %v395 = vcvt.s32.f32 %v393
    %v396 = vcvt.s32.f32 %v394
    %397 = vadd.xlane.f32.xlu0 %v395
    %v398 = vpop.xlane.xlu0 %397
    %399 = vadd.xlane.f32.xlu0 %v396
    %v400 = vpop.xlane.xlu0 %399
    %v401 = vcvt.f32.s32 %v398
    %v402 = vcvt.f32.s32 %v400
    %v403 = vshll.u32 %v402, 16
    %v404 = vadd.s32 %v403, %v401
    %vm405 = vcmp.ge.s32.totalorder %v404, 128
    %v406 = vsel %vm405, %v386, %v385
    %v407 = vor.u32 %v406, 8192
    %v408 = vxor.u32 %v407, 2147483648
    %vm409 = vcmp.ge.s32.totalorder %v29, %v408
    %vm410 = vcmp.ge.s32.totalorder %v30, %v408
    %v411 = vsel %vm409, 1, 0
    %v412 = vsel %vm410, 1, 0
    %v413 = vadd.s32 %v411, %v412
    %v414 = vand.u32 %v413, 65535
    %v415 = vshrl.u32 %v413, 16
    %v416 = vcvt.s32.f32 %v414
    %v417 = vcvt.s32.f32 %v415
    %418 = vadd.xlane.f32.xlu0 %v416
    %v419 = vpop.xlane.xlu0 %418
    %420 = vadd.xlane.f32.xlu0 %v417
    %v421 = vpop.xlane.xlu0 %420
    %v422 = vcvt.f32.s32 %v419
    %v423 = vcvt.f32.s32 %v421
    %v424 = vshll.u32 %v423, 16
    %v425 = vadd.s32 %v424, %v422
    %vm426 = vcmp.ge.s32.totalorder %v425, 128
    %v427 = vsel %vm426, %v407, %v406
    %v428 = vor.u32 %v427, 4096
    %v429 = vxor.u32 %v428, 2147483648
    %vm430 = vcmp.ge.s32.totalorder %v29, %v429
    %vm431 = vcmp.ge.s32.totalorder %v30, %v429
    %v432 = vsel %vm430, 1, 0
    %v433 = vsel %vm431, 1, 0
    %v434 = vadd.s32 %v432, %v433
    %v435 = vand.u32 %v434, 65535
    %v436 = vshrl.u32 %v434, 16
    %v437 = vcvt.s32.f32 %v435
    %v438 = vcvt.s32.f32 %v436
    %439 = vadd.xlane.f32.xlu0 %v437
    %v440 = vpop.xlane.xlu0 %439
    %441 = vadd.xlane.f32.xlu0 %v438
    %v442 = vpop.xlane.xlu0 %441
    %v443 = vcvt.f32.s32 %v440
    %v444 = vcvt.f32.s32 %v442
    %v445 = vshll.u32 %v444, 16
    %v446 = vadd.s32 %v445, %v443
    %vm447 = vcmp.ge.s32.totalorder %v446, 128
    %v448 = vsel %vm447, %v428, %v427
    %v449 = vor.u32 %v448, 2048
    %v450 = vxor.u32 %v449, 2147483648
    %vm451 = vcmp.ge.s32.totalorder %v29, %v450
    %vm452 = vcmp.ge.s32.totalorder %v30, %v450
    %v453 = vsel %vm451, 1, 0
    %v454 = vsel %vm452, 1, 0
    %v455 = vadd.s32 %v453, %v454
    %v456 = vand.u32 %v455, 65535
    %v457 = vshrl.u32 %v455, 16
    %v458 = vcvt.s32.f32 %v456
    %v459 = vcvt.s32.f32 %v457
    %460 = vadd.xlane.f32.xlu0 %v458
    %v461 = vpop.xlane.xlu0 %460
    %462 = vadd.xlane.f32.xlu0 %v459
    %v463 = vpop.xlane.xlu0 %462
    %v464 = vcvt.f32.s32 %v461
    %v465 = vcvt.f32.s32 %v463
    %v466 = vshll.u32 %v465, 16
    %v467 = vadd.s32 %v466, %v464
    %vm468 = vcmp.ge.s32.totalorder %v467, 128
    %v469 = vsel %vm468, %v449, %v448
    %v470 = vor.u32 %v469, 1024
    %v471 = vxor.u32 %v470, 2147483648
    %vm472 = vcmp.ge.s32.totalorder %v29, %v471
    %vm473 = vcmp.ge.s32.totalorder %v30, %v471
    %v474 = vsel %vm472, 1, 0
    %v475 = vsel %vm473, 1, 0
    %v476 = vadd.s32 %v474, %v475
    %v477 = vand.u32 %v476, 65535
    %v478 = vshrl.u32 %v476, 16
    %v479 = vcvt.s32.f32 %v477
    %v480 = vcvt.s32.f32 %v478
    %481 = vadd.xlane.f32.xlu0 %v479
    %v482 = vpop.xlane.xlu0 %481
    %483 = vadd.xlane.f32.xlu0 %v480
    %v484 = vpop.xlane.xlu0 %483
    %v485 = vcvt.f32.s32 %v482
    %v486 = vcvt.f32.s32 %v484
    %v487 = vshll.u32 %v486, 16
    %v488 = vadd.s32 %v487, %v485
    %vm489 = vcmp.ge.s32.totalorder %v488, 128
    %v490 = vsel %vm489, %v470, %v469
    %v491 = vor.u32 %v490, 512
    %v492 = vxor.u32 %v491, 2147483648
    %vm493 = vcmp.ge.s32.totalorder %v29, %v492
    %vm494 = vcmp.ge.s32.totalorder %v30, %v492
    %v495 = vsel %vm493, 1, 0
    %v496 = vsel %vm494, 1, 0
    %v497 = vadd.s32 %v495, %v496
    %v498 = vand.u32 %v497, 65535
    %v499 = vshrl.u32 %v497, 16
    %v500 = vcvt.s32.f32 %v498
    %v501 = vcvt.s32.f32 %v499
    %502 = vadd.xlane.f32.xlu0 %v500
    %v503 = vpop.xlane.xlu0 %502
    %504 = vadd.xlane.f32.xlu0 %v501
    %v505 = vpop.xlane.xlu0 %504
    %v506 = vcvt.f32.s32 %v503
    %v507 = vcvt.f32.s32 %v505
    %v508 = vshll.u32 %v507, 16
    %v509 = vadd.s32 %v508, %v506
    %vm510 = vcmp.ge.s32.totalorder %v509, 128
    %v511 = vsel %vm510, %v491, %v490
    %v512 = vor.u32 %v511, 256
    %v513 = vxor.u32 %v512, 2147483648
    %vm514 = vcmp.ge.s32.totalorder %v29, %v513
    %vm515 = vcmp.ge.s32.totalorder %v30, %v513
    %v516 = vsel %vm514, 1, 0
    %v517 = vsel %vm515, 1, 0
    %v518 = vadd.s32 %v516, %v517
    %v519 = vand.u32 %v518, 65535
    %v520 = vshrl.u32 %v518, 16
    %v521 = vcvt.s32.f32 %v519
    %v522 = vcvt.s32.f32 %v520
    %523 = vadd.xlane.f32.xlu0 %v521
    %v524 = vpop.xlane.xlu0 %523
    %525 = vadd.xlane.f32.xlu0 %v522
    %v526 = vpop.xlane.xlu0 %525
    %v527 = vcvt.f32.s32 %v524
    %v528 = vcvt.f32.s32 %v526
    %v529 = vshll.u32 %v528, 16
    %v530 = vadd.s32 %v529, %v527
    %vm531 = vcmp.ge.s32.totalorder %v530, 128
    %v532 = vsel %vm531, %v512, %v511
    %v533 = vor.u32 %v532, 128
    %v534 = vxor.u32 %v533, 2147483648
    %vm535 = vcmp.ge.s32.totalorder %v29, %v534
    %vm536 = vcmp.ge.s32.totalorder %v30, %v534
    %v537 = vsel %vm535, 1, 0
    %v538 = vsel %vm536, 1, 0
    %v539 = vadd.s32 %v537, %v538
    %v540 = vand.u32 %v539, 65535
    %v541 = vshrl.u32 %v539, 16
    %v542 = vcvt.s32.f32 %v540
    %v543 = vcvt.s32.f32 %v541
    %544 = vadd.xlane.f32.xlu0 %v542
    %v545 = vpop.xlane.xlu0 %544
    %546 = vadd.xlane.f32.xlu0 %v543
    %v547 = vpop.xlane.xlu0 %546
    %v548 = vcvt.f32.s32 %v545
    %v549 = vcvt.f32.s32 %v547
    %v550 = vshll.u32 %v549, 16
    %v551 = vadd.s32 %v550, %v548
    %vm552 = vcmp.ge.s32.totalorder %v551, 128
    %v553 = vsel %vm552, %v533, %v532
    %v554 = vor.u32 %v553, 64
    %v555 = vxor.u32 %v554, 2147483648
    %vm556 = vcmp.ge.s32.totalorder %v29, %v555
    %vm557 = vcmp.ge.s32.totalorder %v30, %v555
    %v558 = vsel %vm556, 1, 0
    %v559 = vsel %vm557, 1, 0
    %v560 = vadd.s32 %v558, %v559
    %v561 = vand.u32 %v560, 65535
    %v562 = vshrl.u32 %v560, 16
    %v563 = vcvt.s32.f32 %v561
    %v564 = vcvt.s32.f32 %v562
    %565 = vadd.xlane.f32.xlu0 %v563
    %v566 = vpop.xlane.xlu0 %565
    %567 = vadd.xlane.f32.xlu0 %v564
    %v568 = vpop.xlane.xlu0 %567
    %v569 = vcvt.f32.s32 %v566
    %v570 = vcvt.f32.s32 %v568
    %v571 = vshll.u32 %v570, 16
    %v572 = vadd.s32 %v571, %v569
    %vm573 = vcmp.ge.s32.totalorder %v572, 128
    %v574 = vsel %vm573, %v554, %v553
    %v575 = vor.u32 %v574, 32
    %v576 = vxor.u32 %v575, 2147483648
    %vm577 = vcmp.ge.s32.totalorder %v29, %v576
    %vm578 = vcmp.ge.s32.totalorder %v30, %v576
    %v579 = vsel %vm577, 1, 0
    %v580 = vsel %vm578, 1, 0
    %v581 = vadd.s32 %v579, %v580
    %v582 = vand.u32 %v581, 65535
    %v583 = vshrl.u32 %v581, 16
    %v584 = vcvt.s32.f32 %v582
    %v585 = vcvt.s32.f32 %v583
    %586 = vadd.xlane.f32.xlu0 %v584
    %v587 = vpop.xlane.xlu0 %586
    %588 = vadd.xlane.f32.xlu0 %v585
    %v589 = vpop.xlane.xlu0 %588
    %v590 = vcvt.f32.s32 %v587
    %v591 = vcvt.f32.s32 %v589
    %v592 = vshll.u32 %v591, 16
    %v593 = vadd.s32 %v592, %v590
    %vm594 = vcmp.ge.s32.totalorder %v593, 128
    %v595 = vsel %vm594, %v575, %v574
    %v596 = vor.u32 %v595, 16
    %v597 = vxor.u32 %v596, 2147483648
    %vm598 = vcmp.ge.s32.totalorder %v29, %v597
    %vm599 = vcmp.ge.s32.totalorder %v30, %v597
    %v600 = vsel %vm598, 1, 0
    %v601 = vsel %vm599, 1, 0
    %v602 = vadd.s32 %v600, %v601
    %v603 = vand.u32 %v602, 65535
    %v604 = vshrl.u32 %v602, 16
    %v605 = vcvt.s32.f32 %v603
    %v606 = vcvt.s32.f32 %v604
    %607 = vadd.xlane.f32.xlu0 %v605
    %v608 = vpop.xlane.xlu0 %607
    %609 = vadd.xlane.f32.xlu0 %v606
    %v610 = vpop.xlane.xlu0 %609
    %v611 = vcvt.f32.s32 %v608
    %v612 = vcvt.f32.s32 %v610
    %v613 = vshll.u32 %v612, 16
    %v614 = vadd.s32 %v613, %v611
    %vm615 = vcmp.ge.s32.totalorder %v614, 128
    %v616 = vsel %vm615, %v596, %v595
    %v617 = vor.u32 %v616, 8
    %v618 = vxor.u32 %v617, 2147483648
    %vm619 = vcmp.ge.s32.totalorder %v29, %v618
    %vm620 = vcmp.ge.s32.totalorder %v30, %v618
    %v621 = vsel %vm619, 1, 0
    %v622 = vsel %vm620, 1, 0
    %v623 = vadd.s32 %v621, %v622
    %v624 = vand.u32 %v623, 65535
    %v625 = vshrl.u32 %v623, 16
    %v626 = vcvt.s32.f32 %v624
    %v627 = vcvt.s32.f32 %v625
    %628 = vadd.xlane.f32.xlu0 %v626
    %v629 = vpop.xlane.xlu0 %628
    %630 = vadd.xlane.f32.xlu0 %v627
    %v631 = vpop.xlane.xlu0 %630
    %v632 = vcvt.f32.s32 %v629
    %v633 = vcvt.f32.s32 %v631
    %v634 = vshll.u32 %v633, 16
    %v635 = vadd.s32 %v634, %v632
    %vm636 = vcmp.ge.s32.totalorder %v635, 128
    %v637 = vsel %vm636, %v617, %v616
    %v638 = vor.u32 %v637, 4
    %v639 = vxor.u32 %v638, 2147483648
    %vm640 = vcmp.ge.s32.totalorder %v29, %v639
    %vm641 = vcmp.ge.s32.totalorder %v30, %v639
    %v642 = vsel %vm640, 1, 0
    %v643 = vsel %vm641, 1, 0
    %v644 = vadd.s32 %v642, %v643
    %v645 = vand.u32 %v644, 65535
    %v646 = vshrl.u32 %v644, 16
    %v647 = vcvt.s32.f32 %v645
    %v648 = vcvt.s32.f32 %v646
    %649 = vadd.xlane.f32.xlu0 %v647
    %v650 = vpop.xlane.xlu0 %649
    %651 = vadd.xlane.f32.xlu0 %v648
    %v652 = vpop.xlane.xlu0 %651
    %v653 = vcvt.f32.s32 %v650
    %v654 = vcvt.f32.s32 %v652
    %v655 = vshll.u32 %v654, 16
    %v656 = vadd.s32 %v655, %v653
    %vm657 = vcmp.ge.s32.totalorder %v656, 128
    %v658 = vsel %vm657, %v638, %v637
    %v659 = vor.u32 %v658, 2
    %v660 = vxor.u32 %v659, 2147483648
    %vm661 = vcmp.ge.s32.totalorder %v29, %v660
    %vm662 = vcmp.ge.s32.totalorder %v30, %v660
    %v663 = vsel %vm661, 1, 0
    %v664 = vsel %vm662, 1, 0
    %v665 = vadd.s32 %v663, %v664
    %v666 = vand.u32 %v665, 65535
    %v667 = vshrl.u32 %v665, 16
    %v668 = vcvt.s32.f32 %v666
    %v669 = vcvt.s32.f32 %v667
    %670 = vadd.xlane.f32.xlu0 %v668
    %v671 = vpop.xlane.xlu0 %670
    %672 = vadd.xlane.f32.xlu0 %v669
    %v673 = vpop.xlane.xlu0 %672
    %v674 = vcvt.f32.s32 %v671
    %v675 = vcvt.f32.s32 %v673
    %v676 = vshll.u32 %v675, 16
    %v677 = vadd.s32 %v676, %v674
    %vm678 = vcmp.ge.s32.totalorder %v677, 128
    %v679 = vsel %vm678, %v659, %v658
    %v680 = vor.u32 %v679, 1
    %v681 = vxor.u32 %v680, 2147483648
    %vm682 = vcmp.ge.s32.totalorder %v29, %v681
    %vm683 = vcmp.ge.s32.totalorder %v30, %v681
    %v684 = vsel %vm682, 1, 0
    %v685 = vsel %vm683, 1, 0
    %v686 = vadd.s32 %v684, %v685
    %v687 = vand.u32 %v686, 65535
    %v688 = vshrl.u32 %v686, 16
    %v689 = vcvt.s32.f32 %v687
    %v690 = vcvt.s32.f32 %v688
    %691 = vadd.xlane.f32.xlu0 %v689
    %v692 = vpop.xlane.xlu0 %691
    %693 = vadd.xlane.f32.xlu0 %v690
    %v694 = vpop.xlane.xlu0 %693
    %v695 = vcvt.f32.s32 %v692
    %v696 = vcvt.f32.s32 %v694
    %v697 = vshll.u32 %v696, 16
    %v698 = vadd.s32 %v697, %v695
    %vm699 = vcmp.ge.s32.totalorder %v698, 128
    %v700 = vsel %vm699, %v680, %v679
    %v701 = vxor.u32 %v700, 2147483648
    %vm702 = vcmp.ge.s32.totalorder %v701, 0
    %v703 = vxor.u32 %v701, 2147483647
    %v704 = vsel %vm702, %v701, %v703
    %vm706 = vcmp.ge.f32.partialorder %v21, %v704
    %vm707 = vcmp.ge.f32.partialorder %v22, %v704
    %v708 = vsel %vm706, %v21, 0.0
    %v709 = vsel %vm707, %v22, 0.0
    %710 = vst [vmem:[#allocation5] sm:$0xff] %v708
    %711 = vst [vmem:[#allocation5 + $0x8] sm:$0xff] %v709
    // Predicated region
    $region10: #{tpu_custom_call.1} parent=1 // pred_check
      _
    $region11: #{tpu_custom_call.1} parent=1 // pred_check_branch
      %713 = sbr.rel (0) target = $region13
    $region12: #{tpu_custom_call.1} parent=1 // pred_region
      %s715 = ssub.s32 256, 256
      %716 = vsyncadd [#allocation4], %s715
      %s718 = sshll.u32 [#allocation5], 4
      %s719 = int_to_ptr.vmem [resolvable:$true] %s718
      %721 = dma.vmem_to_hbm [thread:$0]  %s719, 256, %s1, [#allocation4]
    $region13: #{tpu_custom_call.1} parent=1 // pred_fallthru
      _
    // Predicated region
    $region14: #{tpu_custom_call.1} parent=1 // pred_check
      _
    $region15: #{tpu_custom_call.1} parent=1 // pred_check_branch
      %723 = sbr.rel (0) target = $region17
    $region16: #{tpu_custom_call.1} parent=1 // pred_region
      %724 = dma.done [#allocation4], 256
    $region17: #{tpu_custom_call.1} parent=1 // pred_fallthru
      _
    %725 = vsyncpa [#allocation3], 1
    %726 = vsyncpa [#allocation4], 1

</llo_original>
